<compile_context>
chip_gen: v7x
topology: tpu7x:2x2x1
jax: 0.10.0
libtpu: 0.0.40
codegen_flags: <defaults>
</compile_context>

<pallas_src>
import functools

import jax
import jax.numpy as jnp
from jax.experimental import pallas as pl
from jax.experimental.pallas import tpu as pltpu


DEF_HIDDEN_SIZE = 400
LANE = 128


def _round_up(x, m):
    return ((x + m - 1) // m) * m


# ---------------------------------------------------------------------------
# Fused MLP kernel: one M-tile of the input, all layers resident in VMEM.
# refs = (x_ref, w_0..w_{L-1}, b_0..b_{L-1}, o_ref)
# ---------------------------------------------------------------------------
def _make_mlp_kernel(nb_layers, nonlinear_embedding):
    def kernel(*refs):
        x_ref = refs[0]
        w_refs = refs[1 : 1 + nb_layers]
        b_refs = refs[1 + nb_layers : 1 + 2 * nb_layers]
        o_ref = refs[-1]

        h = x_ref[...]                                       # (tm, in) bf16
        for li in range(nb_layers):
            # bf16 x bf16 operands -> MXU, f32 accumulation.
            acc = jnp.dot(h, w_refs[li][...],
                          preferred_element_type=jnp.float32)
            acc = acc + b_refs[li][...]                      # (1, out_pad) f32 bias
            last = li == nb_layers - 1
            if (not last) or nonlinear_embedding:
                acc = jnp.maximum(acc, 0.0)                  # ReLU epilogue (f32)
            if last:
                o_ref[...] = acc.astype(o_ref.dtype)         # lane-dense 512-wide store
            else:
                h = acc.astype(jnp.bfloat16)                 # single cast per layer

    return kernel


# ---------------------------------------------------------------------------
# Wrapper: flatten like x.view(B, input_size) and run the fused kernel.
# ---------------------------------------------------------------------------
def mlp_feat(x, params, *, nonlinear_embedding=True, tm=1024,
             out_dtype=jnp.bfloat16, return_padded=False):
    ws, bs = params["w"], params["b"]
    nb_layers = len(ws)
    input_size = ws[0].shape[0]
    feature_size = params["feature_size"]
    feat_pad = ws[-1].shape[1]

    B = x.shape[0]
    xf = x.reshape(B, input_size)                            # x.view(B, input_size)
    if xf.dtype != jnp.bfloat16:
        # Prefer producing bf16 upstream; under jit this cast fuses with the
        # producer rather than being a standalone pass.
        xf = xf.astype(jnp.bfloat16)

    # Row-tile size: multiple of 8 sublanes, single tile for tiny batches,
    # and at least 2 grid steps when B > 8 so "parallel" can shard across the
    # two TensorCores on v7x (per-step overhead ~0.35 us is negligible).
    tm = max(8, min(tm, _round_up(B, 8)))
    if B > 8:
        tm = min(tm, _round_up(pl.cdiv(B, 2), 8))
    grid = (pl.cdiv(B, tm),)

    in_specs = [pl.BlockSpec((tm, input_size), lambda i: (i, 0))]
    # Weights/biases: full-array blocks, constant index_map -> VMEM-resident
    # across all grid steps; single-buffered since they are never re-DMA'd.
    for w in ws:
        in_specs.append(
            pl.BlockSpec(w.shape, lambda i: (0, 0), pipeline_mode=pl.Buffered(1)))
    for b in bs:
        in_specs.append(
            pl.BlockSpec(b.shape, lambda i: (0, 0), pipeline_mode=pl.Buffered(1)))
    out_spec = pl.BlockSpec((tm, feat_pad), lambda i: (i, 0))

    kernel = _make_mlp_kernel(nb_layers, nonlinear_embedding)

    out = pl.pallas_call(
        kernel,
        out_shape=jax.ShapeDtypeStruct((B, feat_pad), out_dtype),
        grid=grid,
        in_specs=in_specs,
        out_specs=out_spec,
        compiler_params=pltpu.CompilerParams(
            dimension_semantics=("parallel",),               # 2 TCs on v7x
            vmem_limit_bytes=32 * 1024 * 1024,               # footprint < 8 MiB; safe everywhere
        ),
    )(xf, *ws, *bs)

    if return_padded:
        return out                                           # (B, feat_pad), pad cols are exactly 0
    return out[:, :feature_size]


# ---------------------------------------------------------------------------
# Parameter init mirroring nn.Linear defaults (U(-1/sqrt(fan_in), 1/sqrt(fan_in))).
# Weights are pre-transposed to (in, out), zero-padded so every hidden/output
# dim is a multiple of 128 lanes, and pre-cast to bf16 ONCE here (hoisted out
# of the forward path).  Zero pad rows/cols + zero pad bias guarantee the pad
# columns of every activation are exactly 0, so padding never changes results.
# ---------------------------------------------------------------------------
def init_params(key, input_size=28 * 28, hidden_sizes=None, nb_layers=2):
    assert nb_layers >= 2
    if hidden_sizes is None:
        hidden_sizes = [DEF_HIDDEN_SIZE] * nb_layers
    assert len(hidden_sizes) == nb_layers

    dims_true = [input_size] + list(hidden_sizes)
    dims_pad = [input_size] + [_round_up(h, LANE) for h in hidden_sizes]

    ws, bs = [], []
    keys = jax.random.split(key, 2 * nb_layers)
    for li in range(nb_layers):
        fan_in, fan_out = dims_true[li], dims_true[li + 1]
        in_pad, out_pad = dims_pad[li], dims_pad[li + 1]
        bound = 1.0 / (fan_in ** 0.5)
        w_pt = jax.random.uniform(
            keys[2 * li], (fan_out, fan_in), jnp.float32, -bound, bound
        )                                                    # PyTorch (out, in)
        b = jax.random.uniform(
            keys[2 * li + 1], (fan_out,), jnp.float32, -bound, bound
        )
        w = jnp.zeros((in_pad, out_pad), jnp.float32)
        w = w.at[:fan_in, :fan_out].set(jnp.transpose(w_pt))
        bias = jnp.zeros((1, out_pad), jnp.float32)
        bias = bias.at[:, :fan_out].set(b)
        ws.append(w.astype(jnp.bfloat16))                    # packed (in_pad, out_pad) bf16
        bs.append(bias)                                      # (1, out_pad) f32
    return {"w": ws, "b": bs, "feature_size": hidden_sizes[-1],
            "input_size": input_size}


# Pure-JAX reference (same bf16 weights / f32 accumulation) for a sanity check.
def _ref_forward(x, params, nonlinear_embedding=True):
    B = x.shape[0]
    h = x.reshape(B, params["input_size"]).astype(jnp.bfloat16)
    L = len(params["w"])
    for li in range(L):
        acc = jnp.dot(h, params["w"][li], preferred_element_type=jnp.float32)
        acc = acc + params["b"][li]
        if li < L - 1 or nonlinear_embedding:
            acc = jnp.maximum(acc, 0.0)
        h = acc.astype(jnp.bfloat16) if li < L - 1 else acc
    return h[:, : params["feature_size"]]


if __name__ == "__main__":
    key = jax.random.PRNGKey(0)
    k_param, k_x = jax.random.split(key)

    batch = 2
    input_size = 28 * 28                                     # module default
    # Arbitrary input shape; forward flattens to (B, input_size) like x.view().
    # Produced directly in bf16 so the wrapper's cast is a no-op.
    x = jax.random.normal(k_x, (batch, 1, 28, 28), dtype=jnp.bfloat16)

    params = init_params(k_param, input_size=input_size, nb_layers=2)

    fwd = jax.jit(
        functools.partial(mlp_feat, params=params, nonlinear_embedding=True)
    )
    out = fwd(x)
    out = jax.block_until_ready(out)

    assert out.shape == (batch, DEF_HIDDEN_SIZE), out.shape
    assert bool(jnp.all(jnp.isfinite(out)))

    ref = _ref_forward(x, params, nonlinear_embedding=True)
    err = jnp.max(jnp.abs(out.astype(jnp.float32) - ref.astype(jnp.float32)))
    assert bool(err < 5e-2), float(err)

    print("KERNEL_OK")
</pallas_src>

<mosaic_0001>
module attributes {stable_mosaic.version = 11 : i64} {
  func.func @kernel(%arg0: i32, %arg1: memref<8x784xbf16, #tpu.memory_space<vmem>>, %arg2: memref<784x512xbf16, #tpu.memory_space<vmem>>, %arg3: memref<512x512xbf16, #tpu.memory_space<vmem>>, %arg4: memref<1x512xf32, #tpu.memory_space<vmem>>, %arg5: memref<1x512xf32, #tpu.memory_space<vmem>>, %arg6: memref<8x512xbf16, #tpu.memory_space<vmem>>) attributes {dimension_semantics = [#tpu.dimension_semantics<parallel>], iteration_bounds = array<i64: 1>, scalar_prefetch = 0 : i64, scratch_operands = 0 : i64, tpu.core_type = #tpu.core_type<tc>, window_params = [{transform_indices = @transform_0, window_bounds = array<i64: 8, 784>}, {pipeline_mode = #tpu.pipeline_mode<synchronous>, transform_indices = @transform_1, window_bounds = array<i64: 784, 512>}, {pipeline_mode = #tpu.pipeline_mode<synchronous>, transform_indices = @transform_2, window_bounds = array<i64: 512, 512>}, {pipeline_mode = #tpu.pipeline_mode<synchronous>, transform_indices = @transform_3, window_bounds = array<i64: 1, 512>}, {pipeline_mode = #tpu.pipeline_mode<synchronous>, transform_indices = @transform_4, window_bounds = array<i64: 1, 512>}, {transform_indices = @transform_5, window_bounds = array<i64: 8, 512>}]} {
    %c0 = arith.constant 0 : index
    %c0_0 = arith.constant 0 : index
    %0 = vector.load %arg1[%c0, %c0_0] : memref<8x784xbf16, #tpu.memory_space<vmem>>, vector<8x784xbf16>
    %c0_1 = arith.constant 0 : index
    %c0_2 = arith.constant 0 : index
    %1 = vector.load %arg2[%c0_1, %c0_2] : memref<784x512xbf16, #tpu.memory_space<vmem>>, vector<784x512xbf16>
    %cst = arith.constant dense<0.000000e+00> : vector<8x512xf32>
    %2 = tpu.matmul %0, %1, %cst {dimension_numbers = #tpu.dot_dimension_numbers<[1], [0], [0], [1], [0, 0, 1, 1], [], []>} : vector<8x784xbf16>, vector<784x512xbf16>, vector<8x512xf32> -> vector<8x512xf32>
    %c0_3 = arith.constant 0 : index
    %c0_4 = arith.constant 0 : index
    %3 = vector.load %arg4[%c0_3, %c0_4] : memref<1x512xf32, #tpu.memory_space<vmem>>, vector<1x512xf32>
    %4 = vector.broadcast %3 : vector<1x512xf32> to vector<8x512xf32>
    %5 = arith.addf %2, %4 : vector<8x512xf32>
    %cst_5 = arith.constant 0.000000e+00 : f32
    %6 = vector.broadcast %cst_5 : f32 to vector<8x512xf32>
    %7 = arith.maximumf %5, %6 : vector<8x512xf32>
    %8 = arith.truncf %7 : vector<8x512xf32> to vector<8x512xbf16>
    %c0_6 = arith.constant 0 : index
    %c0_7 = arith.constant 0 : index
    %9 = vector.load %arg3[%c0_6, %c0_7] : memref<512x512xbf16, #tpu.memory_space<vmem>>, vector<512x512xbf16>
    %cst_8 = arith.constant dense<0.000000e+00> : vector<8x512xf32>
    %10 = tpu.matmul %8, %9, %cst_8 {dimension_numbers = #tpu.dot_dimension_numbers<[1], [0], [0], [1], [0, 0, 1, 1], [], []>} : vector<8x512xbf16>, vector<512x512xbf16>, vector<8x512xf32> -> vector<8x512xf32>
    %c0_9 = arith.constant 0 : index
    %c0_10 = arith.constant 0 : index
    %11 = vector.load %arg5[%c0_9, %c0_10] : memref<1x512xf32, #tpu.memory_space<vmem>>, vector<1x512xf32>
    %12 = vector.broadcast %11 : vector<1x512xf32> to vector<8x512xf32>
    %13 = arith.addf %10, %12 : vector<8x512xf32>
    %cst_11 = arith.constant 0.000000e+00 : f32
    %14 = vector.broadcast %cst_11 : f32 to vector<8x512xf32>
    %15 = arith.maximumf %13, %14 : vector<8x512xf32>
    %16 = arith.truncf %15 : vector<8x512xf32> to vector<8x512xbf16>
    %c0_12 = arith.constant 0 : index
    %c0_13 = arith.constant 0 : index
    %17 = vector.load %arg6[%c0_12, %c0_13] : memref<8x512xbf16, #tpu.memory_space<vmem>>, vector<8x512xbf16>
    tpu.vector_store %arg6[%c0_12, %c0_13], %16 {strides = array<i32>} : memref<8x512xbf16, #tpu.memory_space<vmem>>, vector<8x512xbf16>,
    return
  }
  func.func @transform_0(%arg0: i32) -> (i32, i32) {
    %c0_i32 = arith.constant 0 : i32
    %c0_i32_0 = arith.constant 0 : i32
    return %arg0, %c0_i32 : i32, i32
  }
  func.func @transform_1(%arg0: i32) -> (i32, i32) {
    %c0_i32 = arith.constant 0 : i32
    %c0_i32_0 = arith.constant 0 : i32
    %c0_i32_1 = arith.constant 0 : i32
    return %c0_i32, %c0_i32_0 : i32, i32
  }
  func.func @transform_2(%arg0: i32) -> (i32, i32) {
    %c0_i32 = arith.constant 0 : i32
    %c0_i32_0 = arith.constant 0 : i32
    %c0_i32_1 = arith.constant 0 : i32
    return %c0_i32, %c0_i32_0 : i32, i32
  }
  func.func @transform_3(%arg0: i32) -> (i32, i32) {
    %c0_i32 = arith.constant 0 : i32
    %c0_i32_0 = arith.constant 0 : i32
    %c0_i32_1 = arith.constant 0 : i32
    return %c0_i32, %c0_i32_0 : i32, i32
  }
  func.func @transform_4(%arg0: i32) -> (i32, i32) {
    %c0_i32 = arith.constant 0 : i32
    %c0_i32_0 = arith.constant 0 : i32
    %c0_i32_1 = arith.constant 0 : i32
    return %c0_i32, %c0_i32_0 : i32, i32
  }
  func.func @transform_5(%arg0: i32) -> (i32, i32) {
    %c0_i32 = arith.constant 0 : i32
    %c0_i32_0 = arith.constant 0 : i32
    return %arg0, %c0_i32 : i32, i32
  }
}

</mosaic_0001>

<llo_original>
// kernel: mlp_feat.1
$region0: #{mlp_feat.1}
  #allocation0 [shape = 'u32[]', space=smem, size = 0x4, offset = 0x4, fixed_abs, tag = 'smem constant byte address 0x4 - core index']
  #allocation1 [shape = 'u32[144,128]{1,0:T(1,128)}', space=vmem, size = 0x12000, scoped, tag = 'internal scratch']
  %s0 = inlined_call_operand.vmem [shape: bf16[2,784], index: 0, kind: input, shape index: {}]
  %s1 = inlined_call_operand.vmem [shape: bf16[784,512], index: 1, kind: input, shape index: {}]
  %s2 = inlined_call_operand.vmem [shape: bf16[512,512], index: 2, kind: input, shape index: {}]
  %s3 = inlined_call_operand.vmem [shape: f32[1,512], index: 3, kind: input, shape index: {}]
  %s4 = inlined_call_operand.vmem [shape: f32[1,512], index: 4, kind: input, shape index: {}]
  %s5 = inlined_call_operand.hbm [shape: bf16[2,512], index: 5, kind: output, shape index: {}]
  %s6 = sld [smem:[#allocation0]]
  $region30: #{mlp_feat.1} parent=0
    _
  %s8 = ssub.s32 1, %s6
  %s9 = scalar_select 0, %s8, %s6
  $region1: #{mlp_feat.1} parent=0
    #allocation2 [shape = 'u8[8192]{0}', space=vmem, size = 0x2000, scoped, tag = 'output window, operand 0, single buffered']
    #allocation3 [shape = 's32[1]{0}', space=sflag, size = 0x4, scoped, tag = 'scoped memory for mlp_feat.1']
    %10 = vsyncpa [#allocation3], 0
    // Predicated region
    $region2: #{mlp_feat.1} parent=1 // pred_check
      _
    $region3: #{mlp_feat.1} parent=1 // pred_check_branch
      %12 = sbr.rel (0) target = $region5
    $region4: #{mlp_feat.1} parent=1 // pred_region
      _
    $region5: #{mlp_feat.1} parent=1 // pred_fallthru
      _
    // Predicated region
    $region6: #{mlp_feat.1} parent=1 // pred_check
      _
    $region7: #{mlp_feat.1} parent=1 // pred_check_branch
      %14 = sbr.rel (0) target = $region9
    $region8: #{mlp_feat.1} parent=1 // pred_region
      _
    $region9: #{mlp_feat.1} parent=1 // pred_fallthru
      _
    // Predicated region
    $region10: #{mlp_feat.1} parent=1 // pred_check
      _
    $region11: #{mlp_feat.1} parent=1 // pred_check_branch
      %16 = sbr.rel (0) target = $region13
    $region12: #{mlp_feat.1} parent=1 // pred_region
      _
    $region13: #{mlp_feat.1} parent=1 // pred_fallthru
      _
    // Predicated region
    $region14: #{mlp_feat.1} parent=1 // pred_check
      _
    $region15: #{mlp_feat.1} parent=1 // pred_check_branch
      %18 = sbr.rel (0) target = $region17
    $region16: #{mlp_feat.1} parent=1 // pred_region
      _
    $region17: #{mlp_feat.1} parent=1 // pred_fallthru
      _
    // Predicated region
    $region18: #{mlp_feat.1} parent=1 // pred_check
      _
    $region19: #{mlp_feat.1} parent=1 // pred_check_branch
      %20 = sbr.rel (0) target = $region21
    $region20: #{mlp_feat.1} parent=1 // pred_region
      _
    $region21: #{mlp_feat.1} parent=1 // pred_fallthru
      _
    %v22 = vld [vmem:[%s0] sm:$0x7f]
    %v23 = vld [vmem:[%s0 + $0x7] sm:$0x7f]
    %v24 = vld [vmem:[%s0 + $0xe] sm:$0x7f]
    %v25 = vld [vmem:[%s0 + $0x15] sm:$0x7f]
    %v26 = vld [vmem:[%s1] sm:$0xff]
    %v27 = vld [vmem:[%s1 + $0x8] sm:$0xff]
    %v28 = vld [vmem:[%s1 + $0x10] sm:$0xff]
    %v29 = vld [vmem:[%s1 + $0x18] sm:$0xff]
    %v30 = vld [vmem:[%s1 + $0x20] sm:$0xff]
    %v31 = vld [vmem:[%s1 + $0x28] sm:$0xff]
    %v32 = vld [vmem:[%s1 + $0x30] sm:$0xff]
    %v33 = vld [vmem:[%s1 + $0x38] sm:$0xff]
    %v34 = vld [vmem:[%s1 + $0x40] sm:$0xff]
    %v35 = vld [vmem:[%s1 + $0x48] sm:$0xff]
    %v36 = vld [vmem:[%s1 + $0x50] sm:$0xff]
    %v37 = vld [vmem:[%s1 + $0x58] sm:$0xff]
    %v38 = vld [vmem:[%s1 + $0x60] sm:$0xff]
    %v39 = vld [vmem:[%s1 + $0x68] sm:$0xff]
    %v40 = vld [vmem:[%s1 + $0x70] sm:$0xff]
    %v41 = vld [vmem:[%s1 + $0x78] sm:$0xff]
    %v42 = vld [vmem:[%s1 + $0x80] sm:$0xff]
    %v43 = vld [vmem:[%s1 + $0x88] sm:$0xff]
    %v44 = vld [vmem:[%s1 + $0x90] sm:$0xff]
    %v45 = vld [vmem:[%s1 + $0x98] sm:$0xff]
    %v46 = vld [vmem:[%s1 + $0xa0] sm:$0xff]
    %v47 = vld [vmem:[%s1 + $0xa8] sm:$0xff]
    %v48 = vld [vmem:[%s1 + $0xb0] sm:$0xff]
    %v49 = vld [vmem:[%s1 + $0xb8] sm:$0xff]
    %v50 = vld [vmem:[%s1 + $0xc0] sm:$0xff]
    %v51 = vld [vmem:[%s1 + $0xc8] sm:$0xff]
    %v52 = vld [vmem:[%s1 + $0xd0] sm:$0xff]
    %v53 = vld [vmem:[%s1 + $0xd8] sm:$0xff]
    %v54 = vld [vmem:[%s1 + $0xe0] sm:$0xff]
    %v55 = vld [vmem:[%s1 + $0xe8] sm:$0xff]
    %v56 = vld [vmem:[%s1 + $0xf0] sm:$0xff]
    %v57 = vld [vmem:[%s1 + $0xf8] sm:$0xff]
    %v58 = vld [vmem:[%s1 + $0x100] sm:$0xff]
    %v59 = vld [vmem:[%s1 + $0x108] sm:$0xff]
    %v60 = vld [vmem:[%s1 + $0x110] sm:$0xff]
    %v61 = vld [vmem:[%s1 + $0x118] sm:$0xff]
    %v62 = vld [vmem:[%s1 + $0x120] sm:$0xff]
    %v63 = vld [vmem:[%s1 + $0x128] sm:$0xff]
    %v64 = vld [vmem:[%s1 + $0x130] sm:$0xff]
    %v65 = vld [vmem:[%s1 + $0x138] sm:$0xff]
    %v66 = vld [vmem:[%s1 + $0x140] sm:$0xff]
    %v67 = vld [vmem:[%s1 + $0x148] sm:$0xff]
    %v68 = vld [vmem:[%s1 + $0x150] sm:$0xff]
    %v69 = vld [vmem:[%s1 + $0x158] sm:$0xff]
    %v70 = vld [vmem:[%s1 + $0x160] sm:$0xff]
    %v71 = vld [vmem:[%s1 + $0x168] sm:$0xff]
    %v72 = vld [vmem:[%s1 + $0x170] sm:$0xff]
    %v73 = vld [vmem:[%s1 + $0x178] sm:$0xff]
    %v74 = vld [vmem:[%s1 + $0x180] sm:$0xff]
    %v75 = vld [vmem:[%s1 + $0x188] sm:$0xff]
    %v76 = vld [vmem:[%s1 + $0x190] sm:$0xff]
    %v77 = vld [vmem:[%s1 + $0x198] sm:$0xff]
    %v78 = vld [vmem:[%s1 + $0x1a0] sm:$0xff]
    %v79 = vld [vmem:[%s1 + $0x1a8] sm:$0xff]
    %v80 = vld [vmem:[%s1 + $0x1b0] sm:$0xff]
    %v81 = vld [vmem:[%s1 + $0x1b8] sm:$0xff]
    %v82 = vld [vmem:[%s1 + $0x1c0] sm:$0xff]
    %v83 = vld [vmem:[%s1 + $0x1c8] sm:$0xff]
    %v84 = vld [vmem:[%s1 + $0x1d0] sm:$0xff]
    %v85 = vld [vmem:[%s1 + $0x1d8] sm:$0xff]
    %v86 = vld [vmem:[%s1 + $0x1e0] sm:$0xff]
    %v87 = vld [vmem:[%s1 + $0x1e8] sm:$0xff]
    %v88 = vld [vmem:[%s1 + $0x1f0] sm:$0xff]
    %v89 = vld [vmem:[%s1 + $0x1f8] sm:$0xff]
    %v90 = vld [vmem:[%s1 + $0x200] sm:$0xff]
    %v91 = vld [vmem:[%s1 + $0x208] sm:$0xff]
    %v92 = vld [vmem:[%s1 + $0x210] sm:$0xff]
    %v93 = vld [vmem:[%s1 + $0x218] sm:$0xff]
    %v94 = vld [vmem:[%s1 + $0x220] sm:$0xff]
    %v95 = vld [vmem:[%s1 + $0x228] sm:$0xff]
    %v96 = vld [vmem:[%s1 + $0x230] sm:$0xff]
    %v97 = vld [vmem:[%s1 + $0x238] sm:$0xff]
    %v98 = vld [vmem:[%s1 + $0x240] sm:$0xff]
    %v99 = vld [vmem:[%s1 + $0x248] sm:$0xff]
    %v100 = vld [vmem:[%s1 + $0x250] sm:$0xff]
    %v101 = vld [vmem:[%s1 + $0x258] sm:$0xff]
    %v102 = vld [vmem:[%s1 + $0x260] sm:$0xff]
    %v103 = vld [vmem:[%s1 + $0x268] sm:$0xff]
    %v104 = vld [vmem:[%s1 + $0x270] sm:$0xff]
    %v105 = vld [vmem:[%s1 + $0x278] sm:$0xff]
    %v106 = vld [vmem:[%s1 + $0x280] sm:$0xff]
    %v107 = vld [vmem:[%s1 + $0x288] sm:$0xff]
    %v108 = vld [vmem:[%s1 + $0x290] sm:$0xff]
    %v109 = vld [vmem:[%s1 + $0x298] sm:$0xff]
    %v110 = vld [vmem:[%s1 + $0x2a0] sm:$0xff]
    %v111 = vld [vmem:[%s1 + $0x2a8] sm:$0xff]
    %v112 = vld [vmem:[%s1 + $0x2b0] sm:$0xff]
    %v113 = vld [vmem:[%s1 + $0x2b8] sm:$0xff]
    %v114 = vld [vmem:[%s1 + $0x2c0] sm:$0xff]
    %v115 = vld [vmem:[%s1 + $0x2c8] sm:$0xff]
    %v116 = vld [vmem:[%s1 + $0x2d0] sm:$0xff]
    %v117 = vld [vmem:[%s1 + $0x2d8] sm:$0xff]
    %v118 = vld [vmem:[%s1 + $0x2e0] sm:$0xff]
    %v119 = vld [vmem:[%s1 + $0x2e8] sm:$0xff]
    %v120 = vld [vmem:[%s1 + $0x2f0] sm:$0xff]
    %v121 = vld [vmem:[%s1 + $0x2f8] sm:$0xff]
    %v122 = vld [vmem:[%s1 + $0x300] sm:$0xff]
    %v123 = vld [vmem:[%s1 + $0x308] sm:$0xff]
    %v124 = vld [vmem:[%s1 + $0x310] sm:$0xff]
    %v125 = vld [vmem:[%s1 + $0x318] sm:$0xff]
    %v126 = vld [vmem:[%s1 + $0x320] sm:$0xff]
    %v127 = vld [vmem:[%s1 + $0x328] sm:$0xff]
    %v128 = vld [vmem:[%s1 + $0x330] sm:$0xff]
    %v129 = vld [vmem:[%s1 + $0x338] sm:$0xff]
    %v130 = vld [vmem:[%s1 + $0x340] sm:$0xff]
    %v131 = vld [vmem:[%s1 + $0x348] sm:$0xff]
    %v132 = vld [vmem:[%s1 + $0x350] sm:$0xff]
    %v133 = vld [vmem:[%s1 + $0x358] sm:$0xff]
    %v134 = vld [vmem:[%s1 + $0x360] sm:$0xff]
    %v135 = vld [vmem:[%s1 + $0x368] sm:$0xff]
    %v136 = vld [vmem:[%s1 + $0x370] sm:$0xff]
    %v137 = vld [vmem:[%s1 + $0x378] sm:$0xff]
    %v138 = vld [vmem:[%s1 + $0x380] sm:$0xff]
    %v139 = vld [vmem:[%s1 + $0x388] sm:$0xff]
    %v140 = vld [vmem:[%s1 + $0x390] sm:$0xff]
    %v141 = vld [vmem:[%s1 + $0x398] sm:$0xff]
    %v142 = vld [vmem:[%s1 + $0x3a0] sm:$0xff]
    %v143 = vld [vmem:[%s1 + $0x3a8] sm:$0xff]
    %v144 = vld [vmem:[%s1 + $0x3b0] sm:$0xff]
    %v145 = vld [vmem:[%s1 + $0x3b8] sm:$0xff]
    %v146 = vld [vmem:[%s1 + $0x3c0] sm:$0xff]
    %v147 = vld [vmem:[%s1 + $0x3c8] sm:$0xff]
    %v148 = vld [vmem:[%s1 + $0x3d0] sm:$0xff]
    %v149 = vld [vmem:[%s1 + $0x3d8] sm:$0xff]
    %v150 = vld [vmem:[%s1 + $0x3e0] sm:$0xff]
    %v151 = vld [vmem:[%s1 + $0x3e8] sm:$0xff]
    %v152 = vld [vmem:[%s1 + $0x3f0] sm:$0xff]
    %v153 = vld [vmem:[%s1 + $0x3f8] sm:$0xff]
    %v154 = vld [vmem:[%s1 + $0x400] sm:$0xff]
    %v155 = vld [vmem:[%s1 + $0x408] sm:$0xff]
    %v156 = vld [vmem:[%s1 + $0x410] sm:$0xff]
    %v157 = vld [vmem:[%s1 + $0x418] sm:$0xff]
    %v158 = vld [vmem:[%s1 + $0x420] sm:$0xff]
    %v159 = vld [vmem:[%s1 + $0x428] sm:$0xff]
    %v160 = vld [vmem:[%s1 + $0x430] sm:$0xff]
    %v161 = vld [vmem:[%s1 + $0x438] sm:$0xff]
    %v162 = vld [vmem:[%s1 + $0x440] sm:$0xff]
    %v163 = vld [vmem:[%s1 + $0x448] sm:$0xff]
    %v164 = vld [vmem:[%s1 + $0x450] sm:$0xff]
    %v165 = vld [vmem:[%s1 + $0x458] sm:$0xff]
    %v166 = vld [vmem:[%s1 + $0x460] sm:$0xff]
    %v167 = vld [vmem:[%s1 + $0x468] sm:$0xff]
    %v168 = vld [vmem:[%s1 + $0x470] sm:$0xff]
    %v169 = vld [vmem:[%s1 + $0x478] sm:$0xff]
    %v170 = vld [vmem:[%s1 + $0x480] sm:$0xff]
    %v171 = vld [vmem:[%s1 + $0x488] sm:$0xff]
    %v172 = vld [vmem:[%s1 + $0x490] sm:$0xff]
    %v173 = vld [vmem:[%s1 + $0x498] sm:$0xff]
    %v174 = vld [vmem:[%s1 + $0x4a0] sm:$0xff]
    %v175 = vld [vmem:[%s1 + $0x4a8] sm:$0xff]
    %v176 = vld [vmem:[%s1 + $0x4b0] sm:$0xff]
    %v177 = vld [vmem:[%s1 + $0x4b8] sm:$0xff]
    %v178 = vld [vmem:[%s1 + $0x4c0] sm:$0xff]
    %v179 = vld [vmem:[%s1 + $0x4c8] sm:$0xff]
    %v180 = vld [vmem:[%s1 + $0x4d0] sm:$0xff]
    %v181 = vld [vmem:[%s1 + $0x4d8] sm:$0xff]
    %v182 = vld [vmem:[%s1 + $0x4e0] sm:$0xff]
    %v183 = vld [vmem:[%s1 + $0x4e8] sm:$0xff]
    %v184 = vld [vmem:[%s1 + $0x4f0] sm:$0xff]
    %v185 = vld [vmem:[%s1 + $0x4f8] sm:$0xff]
    %v186 = vld [vmem:[%s1 + $0x500] sm:$0xff]
    %v187 = vld [vmem:[%s1 + $0x508] sm:$0xff]
    %v188 = vld [vmem:[%s1 + $0x510] sm:$0xff]
    %v189 = vld [vmem:[%s1 + $0x518] sm:$0xff]
    %v190 = vld [vmem:[%s1 + $0x520] sm:$0xff]
    %v191 = vld [vmem:[%s1 + $0x528] sm:$0xff]
    %v192 = vld [vmem:[%s1 + $0x530] sm:$0xff]
    %v193 = vld [vmem:[%s1 + $0x538] sm:$0xff]
    %v194 = vld [vmem:[%s1 + $0x540] sm:$0xff]
    %v195 = vld [vmem:[%s1 + $0x548] sm:$0xff]
    %v196 = vld [vmem:[%s1 + $0x550] sm:$0xff]
    %v197 = vld [vmem:[%s1 + $0x558] sm:$0xff]
    %v198 = vld [vmem:[%s1 + $0x560] sm:$0xff]
    %v199 = vld [vmem:[%s1 + $0x568] sm:$0xff]
    %v200 = vld [vmem:[%s1 + $0x570] sm:$0xff]
    %v201 = vld [vmem:[%s1 + $0x578] sm:$0xff]
    %v202 = vld [vmem:[%s1 + $0x580] sm:$0xff]
    %v203 = vld [vmem:[%s1 + $0x588] sm:$0xff]
    %v204 = vld [vmem:[%s1 + $0x590] sm:$0xff]
    %v205 = vld [vmem:[%s1 + $0x598] sm:$0xff]
    %v206 = vld [vmem:[%s1 + $0x5a0] sm:$0xff]
    %v207 = vld [vmem:[%s1 + $0x5a8] sm:$0xff]
    %v208 = vld [vmem:[%s1 + $0x5b0] sm:$0xff]
    %v209 = vld [vmem:[%s1 + $0x5b8] sm:$0xff]
    %v210 = vld [vmem:[%s1 + $0x5c0] sm:$0xff]
    %v211 = vld [vmem:[%s1 + $0x5c8] sm:$0xff]
    %v212 = vld [vmem:[%s1 + $0x5d0] sm:$0xff]
    %v213 = vld [vmem:[%s1 + $0x5d8] sm:$0xff]
    %v214 = vld [vmem:[%s1 + $0x5e0] sm:$0xff]
    %v215 = vld [vmem:[%s1 + $0x5e8] sm:$0xff]
    %v216 = vld [vmem:[%s1 + $0x5f0] sm:$0xff]
    %v217 = vld [vmem:[%s1 + $0x5f8] sm:$0xff]
    %v218 = vld [vmem:[%s1 + $0x600] sm:$0xff]
    %v219 = vld [vmem:[%s1 + $0x608] sm:$0xff]
    %v220 = vld [vmem:[%s1 + $0x610] sm:$0xff]
    %v221 = vld [vmem:[%s1 + $0x618] sm:$0xff]
    %v222 = vld [vmem:[%s3] sm:$0xf]
    %v224 = vlaneseq
    %v225 = vshrl.u32 %v224, 7
    %v226 = vsub.s32 0, %v225
    %v227 = vrot.slane %v222, %v226
    %v228 = vlaneseq
    %v229 = vshrl.u32 %v228, 7
    %v230 = vsub.s32 1, %v229
    %v231 = vrot.slane %v222, %v230
    %v232 = vlaneseq
    %v233 = vshrl.u32 %v232, 7
    %v234 = vsub.s32 2, %v233
    %v235 = vrot.slane %v222, %v234
    %v236 = vlaneseq
    %v237 = vshrl.u32 %v236, 7
    %v238 = vsub.s32 3, %v237
    %v239 = vrot.slane %v222, %v238
    %v248 = vcombine.low %v22, %v23
    %v249 = vcombine.high %v22, %v23
    %v250 = vcombine.low %v24, %v25
    %v251 = vcombine.high %v24, %v25
    %v253 = vunpack.c.l.s4 1966171168
    %v254 = vunpack.c.0.s8 %v253
    %v255 = vlaneseq
    %v256 = vshrl.u32 %v255, 7
    %v257 = vsub.s32 %v254, %v256
    %v258 = vrot.slane %v248, %v257
    %v260 = vunpack.c.l.s4 1966171168
    %v261 = vunpack.c.0.s8 %v260
    %v262 = vlaneseq
    %v263 = vshrl.u32 %v262, 7
    %v264 = vsub.s32 %v261, %v263
    %v265 = vrot.slane %v249, %v264
    %v267 = vunpack.c.l.s4 1966171168
    %v268 = vunpack.c.0.s8 %v267
    %v269 = vlaneseq
    %v270 = vshrl.u32 %v269, 7
    %v271 = vsub.s32 %v268, %v270
    %v272 = vrot.slane %v250, %v271
    %v274 = vunpack.c.l.s4 1966171168
    %v275 = vunpack.c.0.s8 %v274
    %v276 = vlaneseq
    %v277 = vshrl.u32 %v276, 7
    %v278 = vsub.s32 %v275, %v277
    %v279 = vrot.slane %v251, %v278
    %v280 = vcombine.low %v258, %v272
    %v281 = vcombine.high %v258, %v272
    %v282 = vcombine.low %v265, %v279
    %v283 = vcombine.high %v265, %v279
    %v285 = vunpack.c.l.s4 1966171168
    %v286 = vunpack.c.0.s8 %v285
    %v287 = vlaneseq
    %v288 = vshrl.u32 %v287, 7
    %v289 = vsub.s32 %v286, %v288
    %v290 = vrot.slane %v280, %v289
    %v292 = vunpack.c.l.s4 1966171168
    %v293 = vunpack.c.0.s8 %v292
    %v294 = vlaneseq
    %v295 = vshrl.u32 %v294, 7
    %v296 = vsub.s32 %v293, %v295
    %v297 = vrot.slane %v282, %v296
    %v299 = vunpack.c.l.s4 1966171168
    %v300 = vunpack.c.0.s8 %v299
    %v301 = vlaneseq
    %v302 = vshrl.u32 %v301, 7
    %v303 = vsub.s32 %v300, %v302
    %v304 = vrot.slane %v281, %v303
    %v306 = vunpack.c.l.s4 1966171168
    %v307 = vunpack.c.0.s8 %v306
    %v308 = vlaneseq
    %v309 = vshrl.u32 %v308, 7
    %v310 = vsub.s32 %v307, %v309
    %v311 = vrot.slane %v283, %v310
    %v312 = vcombine.high %v290, %v290
    %v313 = vcombine.high %v297, %v297
    %v314 = vcombine.high %v304, %v304
    %v517 = vunpack.c.l.b16 %v26
    %v518 = vunpack.c.h.b16 %v26
    %v519 = vunpack.c.l.b16 %v27
    %v520 = vunpack.c.h.b16 %v27
    %v521 = vunpack.c.l.b16 %v28
    %v522 = vunpack.c.h.b16 %v28
    %v523 = vunpack.c.l.b16 %v29
    %v524 = vunpack.c.h.b16 %v29
    %v525 = vunpack.c.l.b16 %v30
    %v526 = vunpack.c.h.b16 %v30
    %v527 = vunpack.c.l.b16 %v31
    %v528 = vunpack.c.h.b16 %v31
    %v529 = vunpack.c.l.b16 %v32
    %v530 = vunpack.c.h.b16 %v32
    %v531 = vunpack.c.l.b16 %v33
    %v532 = vunpack.c.h.b16 %v33
    %v533 = vunpack.c.l.b16 %v34
    %v534 = vunpack.c.h.b16 %v34
    %v535 = vunpack.c.l.b16 %v35
    %v536 = vunpack.c.h.b16 %v35
    %v537 = vunpack.c.l.b16 %v36
    %v538 = vunpack.c.h.b16 %v36
    %v539 = vunpack.c.l.b16 %v37
    %v540 = vunpack.c.h.b16 %v37
    %v541 = vunpack.c.l.b16 %v38
    %v542 = vunpack.c.h.b16 %v38
    %v543 = vunpack.c.l.b16 %v39
    %v544 = vunpack.c.h.b16 %v39
    %v545 = vunpack.c.l.b16 %v40
    %v546 = vunpack.c.h.b16 %v40
    %v547 = vunpack.c.l.b16 %v41
    %v548 = vunpack.c.h.b16 %v41
    %v549 = vunpack.c.l.b16 %v42
    %v550 = vunpack.c.h.b16 %v42
    %v551 = vunpack.c.l.b16 %v43
    %v552 = vunpack.c.h.b16 %v43
    %v553 = vunpack.c.l.b16 %v44
    %v554 = vunpack.c.h.b16 %v44
    %v555 = vunpack.c.l.b16 %v45
    %v556 = vunpack.c.h.b16 %v45
    %v557 = vunpack.c.l.b16 %v46
    %v558 = vunpack.c.h.b16 %v46
    %v559 = vunpack.c.l.b16 %v47
    %v560 = vunpack.c.h.b16 %v47
    %v561 = vunpack.c.l.b16 %v48
    %v562 = vunpack.c.h.b16 %v48
    %v563 = vunpack.c.l.b16 %v49
    %v564 = vunpack.c.h.b16 %v49
    %v565 = vunpack.c.l.b16 %v50
    %v566 = vunpack.c.h.b16 %v50
    %v567 = vunpack.c.l.b16 %v51
    %v568 = vunpack.c.h.b16 %v51
    %v569 = vunpack.c.l.b16 %v52
    %v570 = vunpack.c.h.b16 %v52
    %v571 = vunpack.c.l.b16 %v53
    %v572 = vunpack.c.h.b16 %v53
    %v573 = vunpack.c.l.b16 %v54
    %v574 = vunpack.c.h.b16 %v54
    %v575 = vunpack.c.l.b16 %v55
    %v576 = vunpack.c.h.b16 %v55
    %v577 = vunpack.c.l.b16 %v56
    %v578 = vunpack.c.h.b16 %v56
    %v579 = vunpack.c.l.b16 %v57
    %v580 = vunpack.c.h.b16 %v57
    %v581 = vunpack.c.l.b16 %v58
    %v582 = vunpack.c.h.b16 %v58
    %v583 = vunpack.c.l.b16 %v59
    %v584 = vunpack.c.h.b16 %v59
    %v585 = vunpack.c.l.b16 %v60
    %v586 = vunpack.c.h.b16 %v60
    %v587 = vunpack.c.l.b16 %v61
    %v588 = vunpack.c.h.b16 %v61
    %v589 = vunpack.c.l.b16 %v62
    %v590 = vunpack.c.h.b16 %v62
    %v591 = vunpack.c.l.b16 %v63
    %v592 = vunpack.c.h.b16 %v63
    %v593 = vunpack.c.l.b16 %v64
    %v594 = vunpack.c.h.b16 %v64
    %v595 = vunpack.c.l.b16 %v65
    %v596 = vunpack.c.h.b16 %v65
    %v597 = vunpack.c.l.b16 %v66
    %v598 = vunpack.c.h.b16 %v66
    %v599 = vunpack.c.l.b16 %v67
    %v600 = vunpack.c.h.b16 %v67
    %v601 = vunpack.c.l.b16 %v68
    %v602 = vunpack.c.h.b16 %v68
    %v603 = vunpack.c.l.b16 %v69
    %v604 = vunpack.c.h.b16 %v69
    %v605 = vunpack.c.l.b16 %v70
    %v606 = vunpack.c.h.b16 %v70
    %v607 = vunpack.c.l.b16 %v71
    %v608 = vunpack.c.h.b16 %v71
    %v609 = vunpack.c.l.b16 %v72
    %v610 = vunpack.c.h.b16 %v72
    %v611 = vunpack.c.l.b16 %v73
    %v612 = vunpack.c.h.b16 %v73
    %v613 = vunpack.c.l.b16 %v74
    %v614 = vunpack.c.h.b16 %v74
    %v615 = vunpack.c.l.b16 %v75
    %v616 = vunpack.c.h.b16 %v75
    %v617 = vunpack.c.l.b16 %v76
    %v618 = vunpack.c.h.b16 %v76
    %v619 = vunpack.c.l.b16 %v77
    %v620 = vunpack.c.h.b16 %v77
    %v621 = vunpack.c.l.b16 %v78
    %v622 = vunpack.c.h.b16 %v78
    %v623 = vunpack.c.l.b16 %v79
    %v624 = vunpack.c.h.b16 %v79
    %v625 = vunpack.c.l.b16 %v80
    %v626 = vunpack.c.h.b16 %v80
    %v627 = vunpack.c.l.b16 %v81
    %v628 = vunpack.c.h.b16 %v81
    %v629 = vunpack.c.l.b16 %v82
    %v630 = vunpack.c.h.b16 %v82
    %v631 = vunpack.c.l.b16 %v83
    %v632 = vunpack.c.h.b16 %v83
    %v633 = vunpack.c.l.b16 %v84
    %v634 = vunpack.c.h.b16 %v84
    %v635 = vunpack.c.l.b16 %v85
    %v636 = vunpack.c.h.b16 %v85
    %v637 = vunpack.c.l.b16 %v86
    %v638 = vunpack.c.h.b16 %v86
    %v639 = vunpack.c.l.b16 %v87
    %v640 = vunpack.c.h.b16 %v87
    %v641 = vunpack.c.l.b16 %v88
    %v642 = vunpack.c.h.b16 %v88
    %v643 = vunpack.c.l.b16 %v89
    %v644 = vunpack.c.h.b16 %v89
    %v645 = vunpack.c.l.b16 %v90
    %v646 = vunpack.c.h.b16 %v90
    %v647 = vunpack.c.l.b16 %v91
    %v648 = vunpack.c.h.b16 %v91
    %v649 = vunpack.c.l.b16 %v92
    %v650 = vunpack.c.h.b16 %v92
    %v651 = vunpack.c.l.b16 %v93
    %v652 = vunpack.c.h.b16 %v93
    %v653 = vunpack.c.l.b16 %v94
    %v654 = vunpack.c.h.b16 %v94
    %v655 = vunpack.c.l.b16 %v95
    %v656 = vunpack.c.h.b16 %v95
    %v657 = vunpack.c.l.b16 %v96
    %v658 = vunpack.c.h.b16 %v96
    %v659 = vunpack.c.l.b16 %v97
    %v660 = vunpack.c.h.b16 %v97
    %v661 = vunpack.c.l.b16 %v98
    %v662 = vunpack.c.h.b16 %v98
    %v663 = vunpack.c.l.b16 %v99
    %v664 = vunpack.c.h.b16 %v99
    %v665 = vunpack.c.l.b16 %v100
    %v666 = vunpack.c.h.b16 %v100
    %v667 = vunpack.c.l.b16 %v101
    %v668 = vunpack.c.h.b16 %v101
    %v669 = vunpack.c.l.b16 %v102
    %v670 = vunpack.c.h.b16 %v102
    %v671 = vunpack.c.l.b16 %v103
    %v672 = vunpack.c.h.b16 %v103
    %v673 = vunpack.c.l.b16 %v104
    %v674 = vunpack.c.h.b16 %v104
    %v675 = vunpack.c.l.b16 %v105
    %v676 = vunpack.c.h.b16 %v105
    %v677 = vunpack.c.l.b16 %v106
    %v678 = vunpack.c.h.b16 %v106
    %v679 = vunpack.c.l.b16 %v107
    %v680 = vunpack.c.h.b16 %v107
    %v681 = vunpack.c.l.b16 %v108
    %v682 = vunpack.c.h.b16 %v108
    %v683 = vunpack.c.l.b16 %v109
    %v684 = vunpack.c.h.b16 %v109
    %v685 = vunpack.c.l.b16 %v110
    %v686 = vunpack.c.h.b16 %v110
    %v687 = vunpack.c.l.b16 %v111
    %v688 = vunpack.c.h.b16 %v111
    %v689 = vunpack.c.l.b16 %v112
    %v690 = vunpack.c.h.b16 %v112
    %v691 = vunpack.c.l.b16 %v113
    %v692 = vunpack.c.h.b16 %v113
    %v693 = vunpack.c.l.b16 %v114
    %v694 = vunpack.c.h.b16 %v114
    %v695 = vunpack.c.l.b16 %v115
    %v696 = vunpack.c.h.b16 %v115
    %v697 = vunpack.c.l.b16 %v116
    %v698 = vunpack.c.h.b16 %v116
    %v699 = vunpack.c.l.b16 %v117
    %v700 = vunpack.c.h.b16 %v117
    %v701 = vunpack.c.l.b16 %v118
    %v702 = vunpack.c.h.b16 %v118
    %v703 = vunpack.c.l.b16 %v119
    %v704 = vunpack.c.h.b16 %v119
    %v705 = vunpack.c.l.b16 %v120
    %v706 = vunpack.c.h.b16 %v120
    %v707 = vunpack.c.l.b16 %v121
    %v708 = vunpack.c.h.b16 %v121
    %v709 = vunpack.c.l.b16 %v122
    %v710 = vunpack.c.h.b16 %v122
    %v711 = vunpack.c.l.b16 %v123
    %v712 = vunpack.c.h.b16 %v123
    %v713 = vunpack.c.l.b16 %v124
    %v714 = vunpack.c.h.b16 %v124
    %v715 = vunpack.c.l.b16 %v125
    %v716 = vunpack.c.h.b16 %v125
    %v717 = vunpack.c.l.b16 %v126
    %v718 = vunpack.c.h.b16 %v126
    %v719 = vunpack.c.l.b16 %v127
    %v720 = vunpack.c.h.b16 %v127
    %v721 = vunpack.c.l.b16 %v128
    %v722 = vunpack.c.h.b16 %v128
    %v723 = vunpack.c.l.b16 %v129
    %v724 = vunpack.c.h.b16 %v129
    %v725 = vunpack.c.l.b16 %v130
    %v726 = vunpack.c.h.b16 %v130
    %v727 = vunpack.c.l.b16 %v131
    %v728 = vunpack.c.h.b16 %v131
    %v729 = vunpack.c.l.b16 %v132
    %v730 = vunpack.c.h.b16 %v132
    %v731 = vunpack.c.l.b16 %v133
    %v732 = vunpack.c.h.b16 %v133
    %v733 = vunpack.c.l.b16 %v134
    %v734 = vunpack.c.h.b16 %v134
    %v735 = vunpack.c.l.b16 %v135
    %v736 = vunpack.c.h.b16 %v135
    %v737 = vunpack.c.l.b16 %v136
    %v738 = vunpack.c.h.b16 %v136
    %v739 = vunpack.c.l.b16 %v137
    %v740 = vunpack.c.h.b16 %v137
    %v741 = vunpack.c.l.b16 %v138
    %v742 = vunpack.c.h.b16 %v138
    %v743 = vunpack.c.l.b16 %v139
    %v744 = vunpack.c.h.b16 %v139
    %v745 = vunpack.c.l.b16 %v140
    %v746 = vunpack.c.h.b16 %v140
    %v747 = vunpack.c.l.b16 %v141
    %v748 = vunpack.c.h.b16 %v141
    %v749 = vunpack.c.l.b16 %v142
    %v750 = vunpack.c.h.b16 %v142
    %v751 = vunpack.c.l.b16 %v143
    %v752 = vunpack.c.h.b16 %v143
    %v753 = vunpack.c.l.b16 %v144
    %v754 = vunpack.c.h.b16 %v144
    %v755 = vunpack.c.l.b16 %v145
    %v756 = vunpack.c.h.b16 %v145
    %v757 = vunpack.c.l.b16 %v146
    %v758 = vunpack.c.h.b16 %v146
    %v759 = vunpack.c.l.b16 %v147
    %v760 = vunpack.c.h.b16 %v147
    %v761 = vunpack.c.l.b16 %v148
    %v762 = vunpack.c.h.b16 %v148
    %v763 = vunpack.c.l.b16 %v149
    %v764 = vunpack.c.h.b16 %v149
    %v765 = vunpack.c.l.b16 %v150
    %v766 = vunpack.c.h.b16 %v150
    %v767 = vunpack.c.l.b16 %v151
    %v768 = vunpack.c.h.b16 %v151
    %v769 = vunpack.c.l.b16 %v152
    %v770 = vunpack.c.h.b16 %v152
    %v771 = vunpack.c.l.b16 %v153
    %v772 = vunpack.c.h.b16 %v153
    %v773 = vunpack.c.l.b16 %v154
    %v774 = vunpack.c.h.b16 %v154
    %v775 = vunpack.c.l.b16 %v155
    %v776 = vunpack.c.h.b16 %v155
    %v777 = vunpack.c.l.b16 %v156
    %v778 = vunpack.c.h.b16 %v156
    %v779 = vunpack.c.l.b16 %v157
    %v780 = vunpack.c.h.b16 %v157
    %v781 = vunpack.c.l.b16 %v158
    %v782 = vunpack.c.h.b16 %v158
    %v783 = vunpack.c.l.b16 %v159
    %v784 = vunpack.c.h.b16 %v159
    %v785 = vunpack.c.l.b16 %v160
    %v786 = vunpack.c.h.b16 %v160
    %v787 = vunpack.c.l.b16 %v161
    %v788 = vunpack.c.h.b16 %v161
    %v789 = vunpack.c.l.b16 %v162
    %v790 = vunpack.c.h.b16 %v162
    %v791 = vunpack.c.l.b16 %v163
    %v792 = vunpack.c.h.b16 %v163
    %v793 = vunpack.c.l.b16 %v164
    %v794 = vunpack.c.h.b16 %v164
    %v795 = vunpack.c.l.b16 %v165
    %v796 = vunpack.c.h.b16 %v165
    %v797 = vunpack.c.l.b16 %v166
    %v798 = vunpack.c.h.b16 %v166
    %v799 = vunpack.c.l.b16 %v167
    %v800 = vunpack.c.h.b16 %v167
    %v801 = vunpack.c.l.b16 %v168
    %v802 = vunpack.c.h.b16 %v168
    %v803 = vunpack.c.l.b16 %v169
    %v804 = vunpack.c.h.b16 %v169
    %v805 = vunpack.c.l.b16 %v170
    %v806 = vunpack.c.h.b16 %v170
    %v807 = vunpack.c.l.b16 %v171
    %v808 = vunpack.c.h.b16 %v171
    %v809 = vunpack.c.l.b16 %v172
    %v810 = vunpack.c.h.b16 %v172
    %v811 = vunpack.c.l.b16 %v173
    %v812 = vunpack.c.h.b16 %v173
    %v813 = vunpack.c.l.b16 %v174
    %v814 = vunpack.c.h.b16 %v174
    %v815 = vunpack.c.l.b16 %v175
    %v816 = vunpack.c.h.b16 %v175
    %v817 = vunpack.c.l.b16 %v176
    %v818 = vunpack.c.h.b16 %v176
    %v819 = vunpack.c.l.b16 %v177
    %v820 = vunpack.c.h.b16 %v177
    %v821 = vunpack.c.l.b16 %v178
    %v822 = vunpack.c.h.b16 %v178
    %v823 = vunpack.c.l.b16 %v179
    %v824 = vunpack.c.h.b16 %v179
    %v825 = vunpack.c.l.b16 %v180
    %v826 = vunpack.c.h.b16 %v180
    %v827 = vunpack.c.l.b16 %v181
    %v828 = vunpack.c.h.b16 %v181
    %v829 = vunpack.c.l.b16 %v182
    %v830 = vunpack.c.h.b16 %v182
    %v831 = vunpack.c.l.b16 %v183
    %v832 = vunpack.c.h.b16 %v183
    %v833 = vunpack.c.l.b16 %v184
    %v834 = vunpack.c.h.b16 %v184
    %v835 = vunpack.c.l.b16 %v185
    %v836 = vunpack.c.h.b16 %v185
    %v837 = vunpack.c.l.b16 %v186
    %v838 = vunpack.c.h.b16 %v186
    %v839 = vunpack.c.l.b16 %v187
    %v840 = vunpack.c.h.b16 %v187
    %v841 = vunpack.c.l.b16 %v188
    %v842 = vunpack.c.h.b16 %v188
    %v843 = vunpack.c.l.b16 %v189
    %v844 = vunpack.c.h.b16 %v189
    %v845 = vunpack.c.l.b16 %v190
    %v846 = vunpack.c.h.b16 %v190
    %v847 = vunpack.c.l.b16 %v191
    %v848 = vunpack.c.h.b16 %v191
    %v849 = vunpack.c.l.b16 %v192
    %v850 = vunpack.c.h.b16 %v192
    %v851 = vunpack.c.l.b16 %v193
    %v852 = vunpack.c.h.b16 %v193
    %v853 = vunpack.c.l.b16 %v194
    %v854 = vunpack.c.h.b16 %v194
    %v855 = vunpack.c.l.b16 %v195
    %v856 = vunpack.c.h.b16 %v195
    %v857 = vunpack.c.l.b16 %v196
    %v858 = vunpack.c.h.b16 %v196
    %v859 = vunpack.c.l.b16 %v197
    %v860 = vunpack.c.h.b16 %v197
    %v861 = vunpack.c.l.b16 %v198
    %v862 = vunpack.c.h.b16 %v198
    %v863 = vunpack.c.l.b16 %v199
    %v864 = vunpack.c.h.b16 %v199
    %v865 = vunpack.c.l.b16 %v200
    %v866 = vunpack.c.h.b16 %v200
    %v867 = vunpack.c.l.b16 %v201
    %v868 = vunpack.c.h.b16 %v201
    %v869 = vunpack.c.l.b16 %v202
    %v870 = vunpack.c.h.b16 %v202
    %v871 = vunpack.c.l.b16 %v203
    %v872 = vunpack.c.h.b16 %v203
    %v873 = vunpack.c.l.b16 %v204
    %v874 = vunpack.c.h.b16 %v204
    %v875 = vunpack.c.l.b16 %v205
    %v876 = vunpack.c.h.b16 %v205
    %v877 = vunpack.c.l.b16 %v206
    %v878 = vunpack.c.h.b16 %v206
    %v879 = vunpack.c.l.b16 %v207
    %v880 = vunpack.c.h.b16 %v207
    %v881 = vunpack.c.l.b16 %v208
    %v882 = vunpack.c.h.b16 %v208
    %v883 = vunpack.c.l.b16 %v209
    %v884 = vunpack.c.h.b16 %v209
    %v885 = vunpack.c.l.b16 %v210
    %v886 = vunpack.c.h.b16 %v210
    %v887 = vunpack.c.l.b16 %v211
    %v888 = vunpack.c.h.b16 %v211
    %v889 = vunpack.c.l.b16 %v212
    %v890 = vunpack.c.h.b16 %v212
    %v891 = vunpack.c.l.b16 %v213
    %v892 = vunpack.c.h.b16 %v213
    %v893 = vunpack.c.l.b16 %v214
    %v894 = vunpack.c.h.b16 %v214
    %v895 = vunpack.c.l.b16 %v215
    %v896 = vunpack.c.h.b16 %v215
    %v897 = vunpack.c.l.b16 %v216
    %v898 = vunpack.c.h.b16 %v216
    %v899 = vunpack.c.l.b16 %v217
    %v900 = vunpack.c.h.b16 %v217
    %v901 = vunpack.c.l.b16 %v218
    %v902 = vunpack.c.h.b16 %v218
    %v903 = vunpack.c.l.b16 %v219
    %v904 = vunpack.c.h.b16 %v219
    %v905 = vunpack.c.l.b16 %v220
    %v906 = vunpack.c.h.b16 %v220
    %v907 = vunpack.c.l.b16 %v221
    %v908 = vunpack.c.h.b16 %v221
    %v909 = vpack.c.b16 %v521, %v517
    %v910 = vpack.c.b16 %v522, %v518
    %v911 = vpack.c.b16 %v523, %v519
    %v912 = vpack.c.b16 %v524, %v520
    %v913 = vpack.c.b16 %v529, %v525
    %v914 = vpack.c.b16 %v530, %v526
    %v915 = vpack.c.b16 %v531, %v527
    %v916 = vpack.c.b16 %v532, %v528
    %v917 = vpack.c.b16 %v537, %v533
    %v918 = vpack.c.b16 %v538, %v534
    %v919 = vpack.c.b16 %v539, %v535
    %v920 = vpack.c.b16 %v540, %v536
    %v921 = vpack.c.b16 %v545, %v541
    %v922 = vpack.c.b16 %v546, %v542
    %v923 = vpack.c.b16 %v547, %v543
    %v924 = vpack.c.b16 %v548, %v544
    %v925 = vpack.c.b16 %v553, %v549
    %v926 = vpack.c.b16 %v554, %v550
    %v927 = vpack.c.b16 %v555, %v551
    %v928 = vpack.c.b16 %v556, %v552
    %v929 = vpack.c.b16 %v561, %v557
    %v930 = vpack.c.b16 %v562, %v558
    %v931 = vpack.c.b16 %v563, %v559
    %v932 = vpack.c.b16 %v564, %v560
    %v933 = vpack.c.b16 %v569, %v565
    %v934 = vpack.c.b16 %v570, %v566
    %v935 = vpack.c.b16 %v571, %v567
    %v936 = vpack.c.b16 %v572, %v568
    %v937 = vpack.c.b16 %v577, %v573
    %v938 = vpack.c.b16 %v578, %v574
    %v939 = vpack.c.b16 %v579, %v575
    %v940 = vpack.c.b16 %v580, %v576
    %v941 = vpack.c.b16 %v585, %v581
    %v942 = vpack.c.b16 %v586, %v582
    %v943 = vpack.c.b16 %v587, %v583
    %v944 = vpack.c.b16 %v588, %v584
    %v945 = vpack.c.b16 %v593, %v589
    %v946 = vpack.c.b16 %v594, %v590
    %v947 = vpack.c.b16 %v595, %v591
    %v948 = vpack.c.b16 %v596, %v592
    %v949 = vpack.c.b16 %v601, %v597
    %v950 = vpack.c.b16 %v602, %v598
    %v951 = vpack.c.b16 %v603, %v599
    %v952 = vpack.c.b16 %v604, %v600
    %v953 = vpack.c.b16 %v609, %v605
    %v954 = vpack.c.b16 %v610, %v606
    %v955 = vpack.c.b16 %v611, %v607
    %v956 = vpack.c.b16 %v612, %v608
    %v957 = vpack.c.b16 %v617, %v613
    %v958 = vpack.c.b16 %v618, %v614
    %v959 = vpack.c.b16 %v619, %v615
    %v960 = vpack.c.b16 %v620, %v616
    %v961 = vpack.c.b16 %v625, %v621
    %v962 = vpack.c.b16 %v626, %v622
    %v963 = vpack.c.b16 %v627, %v623
    %v964 = vpack.c.b16 %v628, %v624
    %v965 = vpack.c.b16 %v633, %v629
    %v966 = vpack.c.b16 %v634, %v630
    %v967 = vpack.c.b16 %v635, %v631
    %v968 = vpack.c.b16 %v636, %v632
    %v969 = vpack.c.b16 %v641, %v637
    %v970 = vpack.c.b16 %v642, %v638
    %v971 = vpack.c.b16 %v643, %v639
    %v972 = vpack.c.b16 %v644, %v640
    %v973 = vpack.c.b16 %v649, %v645
    %v974 = vpack.c.b16 %v650, %v646
    %v975 = vpack.c.b16 %v651, %v647
    %v976 = vpack.c.b16 %v652, %v648
    %v977 = vpack.c.b16 %v657, %v653
    %v978 = vpack.c.b16 %v658, %v654
    %v979 = vpack.c.b16 %v659, %v655
    %v980 = vpack.c.b16 %v660, %v656
    %v981 = vpack.c.b16 %v665, %v661
    %v982 = vpack.c.b16 %v666, %v662
    %v983 = vpack.c.b16 %v667, %v663
    %v984 = vpack.c.b16 %v668, %v664
    %v985 = vpack.c.b16 %v673, %v669
    %v986 = vpack.c.b16 %v674, %v670
    %v987 = vpack.c.b16 %v675, %v671
    %v988 = vpack.c.b16 %v676, %v672
    %v989 = vpack.c.b16 %v681, %v677
    %v990 = vpack.c.b16 %v682, %v678
    %v991 = vpack.c.b16 %v683, %v679
    %v992 = vpack.c.b16 %v684, %v680
    %v993 = vpack.c.b16 %v689, %v685
    %v994 = vpack.c.b16 %v690, %v686
    %v995 = vpack.c.b16 %v691, %v687
    %v996 = vpack.c.b16 %v692, %v688
    %v997 = vpack.c.b16 %v697, %v693
    %v998 = vpack.c.b16 %v698, %v694
    %v999 = vpack.c.b16 %v699, %v695
    %v1000 = vpack.c.b16 %v700, %v696
    %v1001 = vpack.c.b16 %v705, %v701
    %v1002 = vpack.c.b16 %v706, %v702
    %v1003 = vpack.c.b16 %v707, %v703
    %v1004 = vpack.c.b16 %v708, %v704
    %v1005 = vpack.c.b16 %v713, %v709
    %v1006 = vpack.c.b16 %v714, %v710
    %v1007 = vpack.c.b16 %v715, %v711
    %v1008 = vpack.c.b16 %v716, %v712
    %v1009 = vpack.c.b16 %v721, %v717
    %v1010 = vpack.c.b16 %v722, %v718
    %v1011 = vpack.c.b16 %v723, %v719
    %v1012 = vpack.c.b16 %v724, %v720
    %v1013 = vpack.c.b16 %v729, %v725
    %v1014 = vpack.c.b16 %v730, %v726
    %v1015 = vpack.c.b16 %v731, %v727
    %v1016 = vpack.c.b16 %v732, %v728
    %v1017 = vpack.c.b16 %v737, %v733
    %v1018 = vpack.c.b16 %v738, %v734
    %v1019 = vpack.c.b16 %v739, %v735
    %v1020 = vpack.c.b16 %v740, %v736
    %v1021 = vpack.c.b16 %v745, %v741
    %v1022 = vpack.c.b16 %v746, %v742
    %v1023 = vpack.c.b16 %v747, %v743
    %v1024 = vpack.c.b16 %v748, %v744
    %v1025 = vpack.c.b16 %v753, %v749
    %v1026 = vpack.c.b16 %v754, %v750
    %v1027 = vpack.c.b16 %v755, %v751
    %v1028 = vpack.c.b16 %v756, %v752
    %v1029 = vpack.c.b16 %v761, %v757
    %v1030 = vpack.c.b16 %v762, %v758
    %v1031 = vpack.c.b16 %v763, %v759
    %v1032 = vpack.c.b16 %v764, %v760
    %v1033 = vpack.c.b16 %v769, %v765
    %v1034 = vpack.c.b16 %v770, %v766
    %v1035 = vpack.c.b16 %v771, %v767
    %v1036 = vpack.c.b16 %v772, %v768
    %v1037 = vpack.c.b16 %v777, %v773
    %v1038 = vpack.c.b16 %v778, %v774
    %v1039 = vpack.c.b16 %v779, %v775
    %v1040 = vpack.c.b16 %v780, %v776
    %v1041 = vpack.c.b16 %v785, %v781
    %v1042 = vpack.c.b16 %v786, %v782
    %v1043 = vpack.c.b16 %v787, %v783
    %v1044 = vpack.c.b16 %v788, %v784
    %v1045 = vpack.c.b16 %v793, %v789
    %v1046 = vpack.c.b16 %v794, %v790
    %v1047 = vpack.c.b16 %v795, %v791
    %v1048 = vpack.c.b16 %v796, %v792
    %v1049 = vpack.c.b16 %v801, %v797
    %v1050 = vpack.c.b16 %v802, %v798
    %v1051 = vpack.c.b16 %v803, %v799
    %v1052 = vpack.c.b16 %v804, %v800
    %v1053 = vpack.c.b16 %v809, %v805
    %v1054 = vpack.c.b16 %v810, %v806
    %v1055 = vpack.c.b16 %v811, %v807
    %v1056 = vpack.c.b16 %v812, %v808
    %v1057 = vpack.c.b16 %v817, %v813
    %v1058 = vpack.c.b16 %v818, %v814
    %v1059 = vpack.c.b16 %v819, %v815
    %v1060 = vpack.c.b16 %v820, %v816
    %v1061 = vpack.c.b16 %v825, %v821
    %v1062 = vpack.c.b16 %v826, %v822
    %v1063 = vpack.c.b16 %v827, %v823
    %v1064 = vpack.c.b16 %v828, %v824
    %v1065 = vpack.c.b16 %v833, %v829
    %v1066 = vpack.c.b16 %v834, %v830
    %v1067 = vpack.c.b16 %v835, %v831
    %v1068 = vpack.c.b16 %v836, %v832
    %v1069 = vpack.c.b16 %v841, %v837
    %v1070 = vpack.c.b16 %v842, %v838
    %v1071 = vpack.c.b16 %v843, %v839
    %v1072 = vpack.c.b16 %v844, %v840
    %v1073 = vpack.c.b16 %v849, %v845
    %v1074 = vpack.c.b16 %v850, %v846
    %v1075 = vpack.c.b16 %v851, %v847
    %v1076 = vpack.c.b16 %v852, %v848
    %v1077 = vpack.c.b16 %v857, %v853
    %v1078 = vpack.c.b16 %v858, %v854
    %v1079 = vpack.c.b16 %v859, %v855
    %v1080 = vpack.c.b16 %v860, %v856
    %v1081 = vpack.c.b16 %v865, %v861
    %v1082 = vpack.c.b16 %v866, %v862
    %v1083 = vpack.c.b16 %v867, %v863
    %v1084 = vpack.c.b16 %v868, %v864
    %v1085 = vpack.c.b16 %v873, %v869
    %v1086 = vpack.c.b16 %v874, %v870
    %v1087 = vpack.c.b16 %v875, %v871
    %v1088 = vpack.c.b16 %v876, %v872
    %v1089 = vpack.c.b16 %v881, %v877
    %v1090 = vpack.c.b16 %v882, %v878
    %v1091 = vpack.c.b16 %v883, %v879
    %v1092 = vpack.c.b16 %v884, %v880
    %v1093 = vpack.c.b16 %v889, %v885
    %v1094 = vpack.c.b16 %v890, %v886
    %v1095 = vpack.c.b16 %v891, %v887
    %v1096 = vpack.c.b16 %v892, %v888
    %v1097 = vpack.c.b16 %v897, %v893
    %v1098 = vpack.c.b16 %v898, %v894
    %v1099 = vpack.c.b16 %v899, %v895
    %v1100 = vpack.c.b16 %v900, %v896
    %v1101 = vpack.c.b16 %v905, %v901
    %v1102 = vpack.c.b16 %v906, %v902
    %v1103 = vpack.c.b16 %v907, %v903
    %v1104 = vpack.c.b16 %v908, %v904
    %vm1301 = vcmask 130048
    %v1303 = vsel %vm1301, %v313, 0
    %1305 = vmatprep.subr.bf16.mxu0 %v910
    %1306 = vmatpush1.bf16.msra.mxu0 %v909
    %1307 = vmatprep.subr.bf16.mxu0 %v914
    %1308 = vmatpush1.bf16.msra.mxu0 %v913
    %1309 = vmatprep.subr.bf16.mxu0 %v918
    %1310 = vmatpush1.bf16.msra.mxu0 %v917
    %1311 = vmatprep.subr.bf16.mxu0 %v922
    %1312 = vmatpush1.bf16.msra.mxu0 %v921
    %1313 = vmatprep.subr.bf16.mxu0 %v926
    %1314 = vmatpush1.bf16.msra.mxu0 %v925
    %1315 = vmatprep.subr.bf16.mxu0 %v930
    %1316 = vmatpush1.bf16.msra.mxu0 %v929
    %1317 = vmatprep.subr.bf16.mxu0 %v934
    %1318 = vmatpush1.bf16.msra.mxu0 %v933
    %1319 = vmatprep.subr.bf16.mxu0 %v938
    %1320 = vmatpush1.bf16.msra.mxu0 %v937
    %1321 = vmatprep.subr.bf16.mxu0 %v942
    %1322 = vmatpush1.bf16.msra.mxu0 %v941
    %1323 = vmatprep.subr.bf16.mxu0 %v946
    %1324 = vmatpush1.bf16.msra.mxu0 %v945
    %1325 = vmatprep.subr.bf16.mxu0 %v950
    %1326 = vmatpush1.bf16.msra.mxu0 %v949
    %1327 = vmatprep.subr.bf16.mxu0 %v954
    %1328 = vmatpush1.bf16.msra.mxu0 %v953
    %1329 = vmatprep.subr.bf16.mxu0 %v958
    %1330 = vmatpush1.bf16.msra.mxu0 %v957
    %1331 = vmatprep.subr.bf16.mxu0 %v962
    %1332 = vmatpush1.bf16.msra.mxu0 %v961
    %1333 = vmatprep.subr.bf16.mxu0 %v966
    %1334 = vmatpush1.bf16.msra.mxu0 %v965
    %1335 = vmatprep.subr.bf16.mxu0 %v970
    %1336 = vmatpush1.bf16.msra.mxu0 %v969
    %1337 = vmatprep.mubr.bf16.mxu0 %v304
    %1338 = vmatmul.mubr.bf16.gmra.mrb[0].mxu0 %v290
    %v1339 = vpop.f32.mrb[0].mxu0
    %v1340 = vadd.f32 %v227, %v1339
    %v1341 = vpop.f32.mrb[0].mxu0
    %v1342 = vadd.f32 %v231, %v1341
    %v1343 = vpop.f32.mrb[0].mxu0
    %v1344 = vpop.f32.mrb[0].mxu0
    %1345 = vdwg.mxu0
    %1346 = vmatprep.subr.bf16.mxu0 %v974
    %1347 = vmatpush1.bf16.msra.mxu0 %v973
    %1348 = vmatprep.subr.bf16.mxu0 %v978
    %1349 = vmatpush1.bf16.msra.mxu0 %v977
    %1350 = vmatprep.subr.bf16.mxu0 %v982
    %1351 = vmatpush1.bf16.msra.mxu0 %v981
    %1352 = vmatprep.subr.bf16.mxu0 %v986
    %1353 = vmatpush1.bf16.msra.mxu0 %v985
    %1354 = vmatprep.subr.bf16.mxu0 %v990
    %1355 = vmatpush1.bf16.msra.mxu0 %v989
    %1356 = vmatprep.subr.bf16.mxu0 %v994
    %1357 = vmatpush1.bf16.msra.mxu0 %v993
    %1358 = vmatprep.subr.bf16.mxu0 %v998
    %1359 = vmatpush1.bf16.msra.mxu0 %v997
    %1360 = vmatprep.subr.bf16.mxu0 %v1002
    %1361 = vmatpush1.bf16.msra.mxu0 %v1001
    %1362 = vmatprep.subr.bf16.mxu0 %v1006
    %1363 = vmatpush1.bf16.msra.mxu0 %v1005
    %1364 = vmatprep.subr.bf16.mxu0 %v1010
    %1365 = vmatpush1.bf16.msra.mxu0 %v1009
    %1366 = vmatprep.subr.bf16.mxu0 %v1014
    %1367 = vmatpush1.bf16.msra.mxu0 %v1013
    %1368 = vmatprep.subr.bf16.mxu0 %v1018
    %1369 = vmatpush1.bf16.msra.mxu0 %v1017
    %1370 = vmatprep.subr.bf16.mxu0 %v1022
    %1371 = vmatpush1.bf16.msra.mxu0 %v1021
    %1372 = vmatprep.subr.bf16.mxu0 %v1026
    %1373 = vmatpush1.bf16.msra.mxu0 %v1025
    %1374 = vmatprep.subr.bf16.mxu0 %v1030
    %1375 = vmatpush1.bf16.msra.mxu0 %v1029
    %1376 = vmatprep.subr.bf16.mxu0 %v1034
    %1377 = vmatpush1.bf16.msra.mxu0 %v1033
    %1378 = vmatprep.mubr.bf16.mxu0 %v314
    %1379 = vmatmul.mubr.bf16.gmra.mrb[0].mxu0 %v312
    %v1380 = vpop.f32.mrb[0].mxu0
    %v1381 = vadd.f32 %v1340, %v1380
    %v1382 = vpop.f32.mrb[0].mxu0
    %v1383 = vadd.f32 %v1342, %v1382
    %v1384 = vpop.f32.mrb[0].mxu0
    %v1385 = vpop.f32.mrb[0].mxu0
    %1386 = vdwg.mxu0
    %1387 = vmatprep.subr.bf16.mxu0 %v1038
    %1388 = vmatpush1.bf16.msra.mxu0 %v1037
    %1389 = vmatprep.subr.bf16.mxu0 %v1042
    %1390 = vmatpush1.bf16.msra.mxu0 %v1041
    %1391 = vmatprep.subr.bf16.mxu0 %v1046
    %1392 = vmatpush1.bf16.msra.mxu0 %v1045
    %1393 = vmatprep.subr.bf16.mxu0 %v1050
    %1394 = vmatpush1.bf16.msra.mxu0 %v1049
    %1395 = vmatprep.subr.bf16.mxu0 %v1054
    %1396 = vmatpush1.bf16.msra.mxu0 %v1053
    %1397 = vmatprep.subr.bf16.mxu0 %v1058
    %1398 = vmatpush1.bf16.msra.mxu0 %v1057
    %1399 = vmatprep.subr.bf16.mxu0 %v1062
    %1400 = vmatpush1.bf16.msra.mxu0 %v1061
    %1401 = vmatprep.subr.bf16.mxu0 %v1066
    %1402 = vmatpush1.bf16.msra.mxu0 %v1065
    %1403 = vmatprep.subr.bf16.mxu0 %v1070
    %1404 = vmatpush1.bf16.msra.mxu0 %v1069
    %1405 = vmatprep.subr.bf16.mxu0 %v1074
    %1406 = vmatpush1.bf16.msra.mxu0 %v1073
    %1407 = vmatprep.subr.bf16.mxu0 %v1078
    %1408 = vmatpush1.bf16.msra.mxu0 %v1077
    %1409 = vmatprep.subr.bf16.mxu0 %v1082
    %1410 = vmatpush1.bf16.msra.mxu0 %v1081
    %1411 = vmatprep.subr.bf16.mxu0 %v1086
    %1412 = vmatpush1.bf16.msra.mxu0 %v1085
    %1413 = vmatprep.subr.bf16.mxu0 %v1090
    %1414 = vmatpush1.bf16.msra.mxu0 %v1089
    %1415 = vmatprep.subr.bf16.mxu0 %v1094
    %1416 = vmatpush1.bf16.msra.mxu0 %v1093
    %1417 = vmatprep.subr.bf16.mxu0 %v1098
    %1418 = vmatpush1.bf16.msra.mxu0 %v1097
    %1419 = vmatprep.mubr.bf16.mxu0 %v311
    %1420 = vmatmul.mubr.bf16.gmra.mrb[0].mxu0 %v297
    %v1421 = vpop.f32.mrb[0].mxu0
    %v1422 = vadd.f32 %v1381, %v1421
    %v1423 = vpop.f32.mrb[0].mxu0
    %v1424 = vadd.f32 %v1383, %v1423
    %v1425 = vpop.f32.mrb[0].mxu0
    %v1426 = vpop.f32.mrb[0].mxu0
    %1427 = vdwg.mxu0
    %1428 = vmatprep.subr.bf16.mxu0 %v1102
    %1429 = vmatpush1.bf16.msra.mxu0 %v1101
    %1430 = vmatprep.subr.bf16.mxu0 0
    %1431 = vmatpush1.bf16.msra.mxu0 0
    %1432 = vmatprep.subr.bf16.mxu0 0
    %1433 = vmatpush1.bf16.msra.mxu0 0
    %1434 = vmatprep.subr.bf16.mxu0 0
    %1435 = vmatpush1.bf16.msra.mxu0 0
    %1436 = vmatprep.subr.bf16.mxu0 0
    %1437 = vmatpush1.bf16.msra.mxu0 0
    %1438 = vmatprep.subr.bf16.mxu0 0
    %1439 = vmatpush1.bf16.msra.mxu0 0
    %1440 = vmatprep.subr.bf16.mxu0 0
    %1441 = vmatpush1.bf16.msra.mxu0 0
    %1442 = vmatprep.subr.bf16.mxu0 0
    %1443 = vmatpush1.bf16.msra.mxu0 0
    %1444 = vmatprep.subr.bf16.mxu0 0
    %1445 = vmatpush1.bf16.msra.mxu0 0
    %1446 = vmatprep.subr.bf16.mxu0 0
    %1447 = vmatpush1.bf16.msra.mxu0 0
    %1448 = vmatprep.subr.bf16.mxu0 0
    %1449 = vmatpush1.bf16.msra.mxu0 0
    %1450 = vmatprep.subr.bf16.mxu0 0
    %1451 = vmatpush1.bf16.msra.mxu0 0
    %1452 = vmatprep.subr.bf16.mxu0 0
    %1453 = vmatpush1.bf16.msra.mxu0 0
    %1454 = vmatprep.subr.bf16.mxu0 0
    %1455 = vmatpush1.bf16.msra.mxu0 0
    %1456 = vmatprep.subr.bf16.mxu0 0
    %1457 = vmatpush1.bf16.msra.mxu0 0
    %1458 = vmatprep.subr.bf16.mxu0 0
    %1459 = vmatpush1.bf16.msra.mxu0 0
    %1460 = vmatprep.mubr.bf16.mxu0 0
    %1461 = vmatmul.mubr.bf16.gmra.mrb[0].mxu0 %v1303
    %v1462 = vpop.f32.mrb[0].mxu0
    %v1463 = vadd.f32 %v1422, %v1462
    %v1464 = vpop.f32.mrb[0].mxu0
    %v1465 = vadd.f32 %v1424, %v1464
    %v1466 = vpop.f32.mrb[0].mxu0
    %v1467 = vpop.f32.mrb[0].mxu0
    %1468 = vdwg.mxu0
    %1469 = vmatprep.subr.bf16.mxu0 %v912
    %1470 = vmatpush1.bf16.msra.mxu0 %v911
    %1471 = vmatprep.subr.bf16.mxu0 %v916
    %1472 = vmatpush1.bf16.msra.mxu0 %v915
    %1473 = vmatprep.subr.bf16.mxu0 %v920
    %1474 = vmatpush1.bf16.msra.mxu0 %v919
    %1475 = vmatprep.subr.bf16.mxu0 %v924
    %1476 = vmatpush1.bf16.msra.mxu0 %v923
    %1477 = vmatprep.subr.bf16.mxu0 %v928
    %1478 = vmatpush1.bf16.msra.mxu0 %v927
    %1479 = vmatprep.subr.bf16.mxu0 %v932
    %1480 = vmatpush1.bf16.msra.mxu0 %v931
    %1481 = vmatprep.subr.bf16.mxu0 %v936
    %1482 = vmatpush1.bf16.msra.mxu0 %v935
    %1483 = vmatprep.subr.bf16.mxu0 %v940
    %1484 = vmatpush1.bf16.msra.mxu0 %v939
    %1485 = vmatprep.subr.bf16.mxu0 %v944
    %1486 = vmatpush1.bf16.msra.mxu0 %v943
    %1487 = vmatprep.subr.bf16.mxu0 %v948
    %1488 = vmatpush1.bf16.msra.mxu0 %v947
    %1489 = vmatprep.subr.bf16.mxu0 %v952
    %1490 = vmatpush1.bf16.msra.mxu0 %v951
    %1491 = vmatprep.subr.bf16.mxu0 %v956
    %1492 = vmatpush1.bf16.msra.mxu0 %v955
    %1493 = vmatprep.subr.bf16.mxu0 %v960
    %1494 = vmatpush1.bf16.msra.mxu0 %v959
    %1495 = vmatprep.subr.bf16.mxu0 %v964
    %1496 = vmatpush1.bf16.msra.mxu0 %v963
    %1497 = vmatprep.subr.bf16.mxu0 %v968
    %1498 = vmatpush1.bf16.msra.mxu0 %v967
    %1499 = vmatprep.subr.bf16.mxu0 %v972
    %1500 = vmatpush1.bf16.msra.mxu0 %v971
    %1501 = vmatprep.mubr.bf16.mxu0 %v304
    %1502 = vmatmul.mubr.bf16.gmra.mrb[0].mxu0 %v290
    %v1503 = vpop.f32.mrb[0].mxu0
    %v1504 = vadd.f32 %v235, %v1503
    %v1505 = vpop.f32.mrb[0].mxu0
    %v1506 = vadd.f32 %v239, %v1505
    %v1507 = vpop.f32.mrb[0].mxu0
    %v1508 = vpop.f32.mrb[0].mxu0
    %1509 = vdwg.mxu0
    %1510 = vmatprep.subr.bf16.mxu0 %v976
    %1511 = vmatpush1.bf16.msra.mxu0 %v975
    %1512 = vmatprep.subr.bf16.mxu0 %v980
    %1513 = vmatpush1.bf16.msra.mxu0 %v979
    %1514 = vmatprep.subr.bf16.mxu0 %v984
    %1515 = vmatpush1.bf16.msra.mxu0 %v983
    %1516 = vmatprep.subr.bf16.mxu0 %v988
    %1517 = vmatpush1.bf16.msra.mxu0 %v987
    %1518 = vmatprep.subr.bf16.mxu0 %v992
    %1519 = vmatpush1.bf16.msra.mxu0 %v991
    %1520 = vmatprep.subr.bf16.mxu0 %v996
    %1521 = vmatpush1.bf16.msra.mxu0 %v995
    %1522 = vmatprep.subr.bf16.mxu0 %v1000
    %1523 = vmatpush1.bf16.msra.mxu0 %v999
    %1524 = vmatprep.subr.bf16.mxu0 %v1004
    %1525 = vmatpush1.bf16.msra.mxu0 %v1003
    %1526 = vmatprep.subr.bf16.mxu0 %v1008
    %1527 = vmatpush1.bf16.msra.mxu0 %v1007
    %1528 = vmatprep.subr.bf16.mxu0 %v1012
    %1529 = vmatpush1.bf16.msra.mxu0 %v1011
    %1530 = vmatprep.subr.bf16.mxu0 %v1016
    %1531 = vmatpush1.bf16.msra.mxu0 %v1015
    %1532 = vmatprep.subr.bf16.mxu0 %v1020
    %1533 = vmatpush1.bf16.msra.mxu0 %v1019
    %1534 = vmatprep.subr.bf16.mxu0 %v1024
    %1535 = vmatpush1.bf16.msra.mxu0 %v1023
    %1536 = vmatprep.subr.bf16.mxu0 %v1028
    %1537 = vmatpush1.bf16.msra.mxu0 %v1027
    %1538 = vmatprep.subr.bf16.mxu0 %v1032
    %1539 = vmatpush1.bf16.msra.mxu0 %v1031
    %1540 = vmatprep.subr.bf16.mxu0 %v1036
    %1541 = vmatpush1.bf16.msra.mxu0 %v1035
    %1542 = vmatprep.mubr.bf16.mxu0 %v314
    %1543 = vmatmul.mubr.bf16.gmra.mrb[0].mxu0 %v312
    %v1544 = vpop.f32.mrb[0].mxu0
    %v1545 = vadd.f32 %v1504, %v1544
    %v1546 = vpop.f32.mrb[0].mxu0
    %v1547 = vadd.f32 %v1506, %v1546
    %v1548 = vpop.f32.mrb[0].mxu0
    %v1549 = vpop.f32.mrb[0].mxu0
    %1550 = vdwg.mxu0
    %1551 = vmatprep.subr.bf16.mxu0 %v1040
    %1552 = vmatpush1.bf16.msra.mxu0 %v1039
    %1553 = vmatprep.subr.bf16.mxu0 %v1044
    %1554 = vmatpush1.bf16.msra.mxu0 %v1043
    %1555 = vmatprep.subr.bf16.mxu0 %v1048
    %1556 = vmatpush1.bf16.msra.mxu0 %v1047
    %1557 = vmatprep.subr.bf16.mxu0 %v1052
    %1558 = vmatpush1.bf16.msra.mxu0 %v1051
    %1559 = vmatprep.subr.bf16.mxu0 %v1056
    %1560 = vmatpush1.bf16.msra.mxu0 %v1055
    %1561 = vmatprep.subr.bf16.mxu0 %v1060
    %1562 = vmatpush1.bf16.msra.mxu0 %v1059
    %1563 = vmatprep.subr.bf16.mxu0 %v1064
    %1564 = vmatpush1.bf16.msra.mxu0 %v1063
    %1565 = vmatprep.subr.bf16.mxu0 %v1068
    %1566 = vmatpush1.bf16.msra.mxu0 %v1067
    %1567 = vmatprep.subr.bf16.mxu0 %v1072
    %1568 = vmatpush1.bf16.msra.mxu0 %v1071
    %1569 = vmatprep.subr.bf16.mxu0 %v1076
    %1570 = vmatpush1.bf16.msra.mxu0 %v1075
    %1571 = vmatprep.subr.bf16.mxu0 %v1080
    %1572 = vmatpush1.bf16.msra.mxu0 %v1079
    %1573 = vmatprep.subr.bf16.mxu0 %v1084
    %1574 = vmatpush1.bf16.msra.mxu0 %v1083
    %1575 = vmatprep.subr.bf16.mxu0 %v1088
    %1576 = vmatpush1.bf16.msra.mxu0 %v1087
    %1577 = vmatprep.subr.bf16.mxu0 %v1092
    %1578 = vmatpush1.bf16.msra.mxu0 %v1091
    %1579 = vmatprep.subr.bf16.mxu0 %v1096
    %1580 = vmatpush1.bf16.msra.mxu0 %v1095
    %1581 = vmatprep.subr.bf16.mxu0 %v1100
    %1582 = vmatpush1.bf16.msra.mxu0 %v1099
    %1583 = vmatprep.mubr.bf16.mxu0 %v311
    %1584 = vmatmul.mubr.bf16.gmra.mrb[0].mxu0 %v297
    %v1585 = vpop.f32.mrb[0].mxu0
    %v1586 = vadd.f32 %v1545, %v1585
    %v1587 = vpop.f32.mrb[0].mxu0
    %v1588 = vadd.f32 %v1547, %v1587
    %v1589 = vpop.f32.mrb[0].mxu0
    %v1590 = vpop.f32.mrb[0].mxu0
    %1591 = vdwg.mxu0
    %1592 = vmatprep.subr.bf16.mxu0 %v1104
    %1593 = vmatpush1.bf16.msra.mxu0 %v1103
    %1594 = vmatprep.subr.bf16.mxu0 0
    %1595 = vmatpush1.bf16.msra.mxu0 0
    %1596 = vmatprep.subr.bf16.mxu0 0
    %1597 = vmatpush1.bf16.msra.mxu0 0
    %1598 = vmatprep.subr.bf16.mxu0 0
    %1599 = vmatpush1.bf16.msra.mxu0 0
    %1600 = vmatprep.subr.bf16.mxu0 0
    %1601 = vmatpush1.bf16.msra.mxu0 0
    %1602 = vmatprep.subr.bf16.mxu0 0
    %1603 = vmatpush1.bf16.msra.mxu0 0
    %1604 = vmatprep.subr.bf16.mxu0 0
    %1605 = vmatpush1.bf16.msra.mxu0 0
    %1606 = vmatprep.subr.bf16.mxu0 0
    %1607 = vmatpush1.bf16.msra.mxu0 0
    %1608 = vmatprep.subr.bf16.mxu0 0
    %1609 = vmatpush1.bf16.msra.mxu0 0
    %1610 = vmatprep.subr.bf16.mxu0 0
    %1611 = vmatpush1.bf16.msra.mxu0 0
    %1612 = vmatprep.subr.bf16.mxu0 0
    %1613 = vmatpush1.bf16.msra.mxu0 0
    %1614 = vmatprep.subr.bf16.mxu0 0
    %1615 = vmatpush1.bf16.msra.mxu0 0
    %1616 = vmatprep.subr.bf16.mxu0 0
    %1617 = vmatpush1.bf16.msra.mxu0 0
    %1618 = vmatprep.subr.bf16.mxu0 0
    %1619 = vmatpush1.bf16.msra.mxu0 0
    %1620 = vmatprep.subr.bf16.mxu0 0
    %1621 = vmatpush1.bf16.msra.mxu0 0
    %1622 = vmatprep.subr.bf16.mxu0 0
    %1623 = vmatpush1.bf16.msra.mxu0 0
    %1624 = vmatprep.mubr.bf16.mxu0 0
    %1625 = vmatmul.mubr.bf16.gmra.mrb[0].mxu0 %v1303
    %v1626 = vpop.f32.mrb[0].mxu0
    %v1627 = vadd.f32 %v1586, %v1626
    %v1628 = vpop.f32.mrb[0].mxu0
    %v1629 = vadd.f32 %v1588, %v1628
    %v1630 = vpop.f32.mrb[0].mxu0
    %v1631 = vpop.f32.mrb[0].mxu0
    %1632 = vdwg.mxu0
    %v1633 = vmax.f32 %v1463, 0.0
    %v1634 = vmax.f32 %v1465, 0.0
    %v1635 = vmax.f32 %v1627, 0.0
    %v1636 = vmax.f32 %v1629, 0.0
    %v1637 = vpack.c.bf16 %v1633, %v1633
    %v1638 = vpack.c.bf16 %v1634, %v1634
    %v1639 = vpack.c.bf16 %v1635, %v1635
    %v1640 = vpack.c.bf16 %v1636, %v1636
    %v1641 = vld [vmem:[%s2] sm:$0xff]
    %v1642 = vld [vmem:[%s2 + $0x8] sm:$0xff]
    %v1643 = vld [vmem:[%s2 + $0x10] sm:$0xff]
    %v1644 = vld [vmem:[%s2 + $0x18] sm:$0xff]
    %v1645 = vld [vmem:[%s2 + $0x20] sm:$0xff]
    %v1646 = vld [vmem:[%s2 + $0x28] sm:$0xff]
    %v1647 = vld [vmem:[%s2 + $0x30] sm:$0xff]
    %v1648 = vld [vmem:[%s2 + $0x38] sm:$0xff]
    %v1649 = vld [vmem:[%s2 + $0x40] sm:$0xff]
    %v1650 = vld [vmem:[%s2 + $0x48] sm:$0xff]
    %v1651 = vld [vmem:[%s2 + $0x50] sm:$0xff]
    %v1652 = vld [vmem:[%s2 + $0x58] sm:$0xff]
    %v1653 = vld [vmem:[%s2 + $0x60] sm:$0xff]
    %v1654 = vld [vmem:[%s2 + $0x68] sm:$0xff]
    %v1655 = vld [vmem:[%s2 + $0x70] sm:$0xff]
    %v1656 = vld [vmem:[%s2 + $0x78] sm:$0xff]
    %v1657 = vld [vmem:[%s2 + $0x80] sm:$0xff]
    %v1658 = vld [vmem:[%s2 + $0x88] sm:$0xff]
    %v1659 = vld [vmem:[%s2 + $0x90] sm:$0xff]
    %v1660 = vld [vmem:[%s2 + $0x98] sm:$0xff]
    %v1661 = vld [vmem:[%s2 + $0xa0] sm:$0xff]
    %v1662 = vld [vmem:[%s2 + $0xa8] sm:$0xff]
    %v1663 = vld [vmem:[%s2 + $0xb0] sm:$0xff]
    %v1664 = vld [vmem:[%s2 + $0xb8] sm:$0xff]
    %v1665 = vld [vmem:[%s2 + $0xc0] sm:$0xff]
    %v1666 = vld [vmem:[%s2 + $0xc8] sm:$0xff]
    %v1667 = vld [vmem:[%s2 + $0xd0] sm:$0xff]
    %v1668 = vld [vmem:[%s2 + $0xd8] sm:$0xff]
    %v1669 = vld [vmem:[%s2 + $0xe0] sm:$0xff]
    %v1670 = vld [vmem:[%s2 + $0xe8] sm:$0xff]
    %v1671 = vld [vmem:[%s2 + $0xf0] sm:$0xff]
    %v1672 = vld [vmem:[%s2 + $0xf8] sm:$0xff]
    %v1673 = vld [vmem:[%s2 + $0x100] sm:$0xff]
    %v1674 = vld [vmem:[%s2 + $0x108] sm:$0xff]
    %v1675 = vld [vmem:[%s2 + $0x110] sm:$0xff]
    %v1676 = vld [vmem:[%s2 + $0x118] sm:$0xff]
    %v1677 = vld [vmem:[%s2 + $0x120] sm:$0xff]
    %v1678 = vld [vmem:[%s2 + $0x128] sm:$0xff]
    %v1679 = vld [vmem:[%s2 + $0x130] sm:$0xff]
    %v1680 = vld [vmem:[%s2 + $0x138] sm:$0xff]
    %v1681 = vld [vmem:[%s2 + $0x140] sm:$0xff]
    %v1682 = vld [vmem:[%s2 + $0x148] sm:$0xff]
    %v1683 = vld [vmem:[%s2 + $0x150] sm:$0xff]
    %v1684 = vld [vmem:[%s2 + $0x158] sm:$0xff]
    %v1685 = vld [vmem:[%s2 + $0x160] sm:$0xff]
    %v1686 = vld [vmem:[%s2 + $0x168] sm:$0xff]
    %v1687 = vld [vmem:[%s2 + $0x170] sm:$0xff]
    %v1688 = vld [vmem:[%s2 + $0x178] sm:$0xff]
    %v1689 = vld [vmem:[%s2 + $0x180] sm:$0xff]
    %v1690 = vld [vmem:[%s2 + $0x188] sm:$0xff]
    %v1691 = vld [vmem:[%s2 + $0x190] sm:$0xff]
    %v1692 = vld [vmem:[%s2 + $0x198] sm:$0xff]
    %v1693 = vld [vmem:[%s2 + $0x1a0] sm:$0xff]
    %v1694 = vld [vmem:[%s2 + $0x1a8] sm:$0xff]
    %v1695 = vld [vmem:[%s2 + $0x1b0] sm:$0xff]
    %v1696 = vld [vmem:[%s2 + $0x1b8] sm:$0xff]
    %v1697 = vld [vmem:[%s2 + $0x1c0] sm:$0xff]
    %v1698 = vld [vmem:[%s2 + $0x1c8] sm:$0xff]
    %v1699 = vld [vmem:[%s2 + $0x1d0] sm:$0xff]
    %v1700 = vld [vmem:[%s2 + $0x1d8] sm:$0xff]
    %v1701 = vld [vmem:[%s2 + $0x1e0] sm:$0xff]
    %v1702 = vld [vmem:[%s2 + $0x1e8] sm:$0xff]
    %v1703 = vld [vmem:[%s2 + $0x1f0] sm:$0xff]
    %v1704 = vld [vmem:[%s2 + $0x1f8] sm:$0xff]
    %v1705 = vld [vmem:[%s2 + $0x200] sm:$0xff]
    %v1706 = vld [vmem:[%s2 + $0x208] sm:$0xff]
    %v1707 = vld [vmem:[%s2 + $0x210] sm:$0xff]
    %v1708 = vld [vmem:[%s2 + $0x218] sm:$0xff]
    %v1709 = vld [vmem:[%s2 + $0x220] sm:$0xff]
    %v1710 = vld [vmem:[%s2 + $0x228] sm:$0xff]
    %v1711 = vld [vmem:[%s2 + $0x230] sm:$0xff]
    %v1712 = vld [vmem:[%s2 + $0x238] sm:$0xff]
    %v1713 = vld [vmem:[%s2 + $0x240] sm:$0xff]
    %v1714 = vld [vmem:[%s2 + $0x248] sm:$0xff]
    %v1715 = vld [vmem:[%s2 + $0x250] sm:$0xff]
    %v1716 = vld [vmem:[%s2 + $0x258] sm:$0xff]
    %v1717 = vld [vmem:[%s2 + $0x260] sm:$0xff]
    %v1718 = vld [vmem:[%s2 + $0x268] sm:$0xff]
    %v1719 = vld [vmem:[%s2 + $0x270] sm:$0xff]
    %v1720 = vld [vmem:[%s2 + $0x278] sm:$0xff]
    %v1721 = vld [vmem:[%s2 + $0x280] sm:$0xff]
    %v1722 = vld [vmem:[%s2 + $0x288] sm:$0xff]
    %v1723 = vld [vmem:[%s2 + $0x290] sm:$0xff]
    %v1724 = vld [vmem:[%s2 + $0x298] sm:$0xff]
    %v1725 = vld [vmem:[%s2 + $0x2a0] sm:$0xff]
    %v1726 = vld [vmem:[%s2 + $0x2a8] sm:$0xff]
    %v1727 = vld [vmem:[%s2 + $0x2b0] sm:$0xff]
    %v1728 = vld [vmem:[%s2 + $0x2b8] sm:$0xff]
    %v1729 = vld [vmem:[%s2 + $0x2c0] sm:$0xff]
    %v1730 = vld [vmem:[%s2 + $0x2c8] sm:$0xff]
    %v1731 = vld [vmem:[%s2 + $0x2d0] sm:$0xff]
    %v1732 = vld [vmem:[%s2 + $0x2d8] sm:$0xff]
    %v1733 = vld [vmem:[%s2 + $0x2e0] sm:$0xff]
    %v1734 = vld [vmem:[%s2 + $0x2e8] sm:$0xff]
    %v1735 = vld [vmem:[%s2 + $0x2f0] sm:$0xff]
    %v1736 = vld [vmem:[%s2 + $0x2f8] sm:$0xff]
    %v1737 = vld [vmem:[%s2 + $0x300] sm:$0xff]
    %v1738 = vld [vmem:[%s2 + $0x308] sm:$0xff]
    %v1739 = vld [vmem:[%s2 + $0x310] sm:$0xff]
    %v1740 = vld [vmem:[%s2 + $0x318] sm:$0xff]
    %v1741 = vld [vmem:[%s2 + $0x320] sm:$0xff]
    %v1742 = vld [vmem:[%s2 + $0x328] sm:$0xff]
    %v1743 = vld [vmem:[%s2 + $0x330] sm:$0xff]
    %v1744 = vld [vmem:[%s2 + $0x338] sm:$0xff]
    %v1745 = vld [vmem:[%s2 + $0x340] sm:$0xff]
    %v1746 = vld [vmem:[%s2 + $0x348] sm:$0xff]
    %v1747 = vld [vmem:[%s2 + $0x350] sm:$0xff]
    %v1748 = vld [vmem:[%s2 + $0x358] sm:$0xff]
    %v1749 = vld [vmem:[%s2 + $0x360] sm:$0xff]
    %v1750 = vld [vmem:[%s2 + $0x368] sm:$0xff]
    %v1751 = vld [vmem:[%s2 + $0x370] sm:$0xff]
    %v1752 = vld [vmem:[%s2 + $0x378] sm:$0xff]
    %v1753 = vld [vmem:[%s2 + $0x380] sm:$0xff]
    %v1754 = vld [vmem:[%s2 + $0x388] sm:$0xff]
    %v1755 = vld [vmem:[%s2 + $0x390] sm:$0xff]
    %v1756 = vld [vmem:[%s2 + $0x398] sm:$0xff]
    %v1757 = vld [vmem:[%s2 + $0x3a0] sm:$0xff]
    %v1758 = vld [vmem:[%s2 + $0x3a8] sm:$0xff]
    %v1759 = vld [vmem:[%s2 + $0x3b0] sm:$0xff]
    %v1760 = vld [vmem:[%s2 + $0x3b8] sm:$0xff]
    %v1761 = vld [vmem:[%s2 + $0x3c0] sm:$0xff]
    %v1762 = vld [vmem:[%s2 + $0x3c8] sm:$0xff]
    %v1763 = vld [vmem:[%s2 + $0x3d0] sm:$0xff]
    %v1764 = vld [vmem:[%s2 + $0x3d8] sm:$0xff]
    %v1765 = vld [vmem:[%s2 + $0x3e0] sm:$0xff]
    %v1766 = vld [vmem:[%s2 + $0x3e8] sm:$0xff]
    %v1767 = vld [vmem:[%s2 + $0x3f0] sm:$0xff]
    %v1768 = vld [vmem:[%s2 + $0x3f8] sm:$0xff]
    %v1769 = vld [vmem:[%s4] sm:$0xf]
    %v1771 = vlaneseq
    %v1772 = vshrl.u32 %v1771, 7
    %v1773 = vsub.s32 0, %v1772
    %v1774 = vrot.slane %v1769, %v1773
    %v1775 = vlaneseq
    %v1776 = vshrl.u32 %v1775, 7
    %v1777 = vsub.s32 1, %v1776
    %v1778 = vrot.slane %v1769, %v1777
    %v1779 = vlaneseq
    %v1780 = vshrl.u32 %v1779, 7
    %v1781 = vsub.s32 2, %v1780
    %v1782 = vrot.slane %v1769, %v1781
    %v1783 = vlaneseq
    %v1784 = vshrl.u32 %v1783, 7
    %v1785 = vsub.s32 3, %v1784
    %v1786 = vrot.slane %v1769, %v1785
    %v1919 = vunpack.c.l.b16 %v1641
    %v1920 = vunpack.c.h.b16 %v1641
    %v1921 = vunpack.c.l.b16 %v1642
    %v1922 = vunpack.c.h.b16 %v1642
    %v1923 = vunpack.c.l.b16 %v1643
    %v1924 = vunpack.c.h.b16 %v1643
    %v1925 = vunpack.c.l.b16 %v1644
    %v1926 = vunpack.c.h.b16 %v1644
    %v1927 = vunpack.c.l.b16 %v1645
    %v1928 = vunpack.c.h.b16 %v1645
    %v1929 = vunpack.c.l.b16 %v1646
    %v1930 = vunpack.c.h.b16 %v1646
    %v1931 = vunpack.c.l.b16 %v1647
    %v1932 = vunpack.c.h.b16 %v1647
    %v1933 = vunpack.c.l.b16 %v1648
    %v1934 = vunpack.c.h.b16 %v1648
    %v1935 = vunpack.c.l.b16 %v1649
    %v1936 = vunpack.c.h.b16 %v1649
    %v1937 = vunpack.c.l.b16 %v1650
    %v1938 = vunpack.c.h.b16 %v1650
    %v1939 = vunpack.c.l.b16 %v1651
    %v1940 = vunpack.c.h.b16 %v1651
    %v1941 = vunpack.c.l.b16 %v1652
    %v1942 = vunpack.c.h.b16 %v1652
    %v1943 = vunpack.c.l.b16 %v1653
    %v1944 = vunpack.c.h.b16 %v1653
    %v1945 = vunpack.c.l.b16 %v1654
    %v1946 = vunpack.c.h.b16 %v1654
    %v1947 = vunpack.c.l.b16 %v1655
    %v1948 = vunpack.c.h.b16 %v1655
    %v1949 = vunpack.c.l.b16 %v1656
    %v1950 = vunpack.c.h.b16 %v1656
    %v1951 = vunpack.c.l.b16 %v1657
    %v1952 = vunpack.c.h.b16 %v1657
    %v1953 = vunpack.c.l.b16 %v1658
    %v1954 = vunpack.c.h.b16 %v1658
    %v1955 = vunpack.c.l.b16 %v1659
    %v1956 = vunpack.c.h.b16 %v1659
    %v1957 = vunpack.c.l.b16 %v1660
    %v1958 = vunpack.c.h.b16 %v1660
    %v1959 = vunpack.c.l.b16 %v1661
    %v1960 = vunpack.c.h.b16 %v1661
    %v1961 = vunpack.c.l.b16 %v1662
    %v1962 = vunpack.c.h.b16 %v1662
    %v1963 = vunpack.c.l.b16 %v1663
    %v1964 = vunpack.c.h.b16 %v1663
    %v1965 = vunpack.c.l.b16 %v1664
    %v1966 = vunpack.c.h.b16 %v1664
    %v1967 = vunpack.c.l.b16 %v1665
    %v1968 = vunpack.c.h.b16 %v1665
    %v1969 = vunpack.c.l.b16 %v1666
    %v1970 = vunpack.c.h.b16 %v1666
    %v1971 = vunpack.c.l.b16 %v1667
    %v1972 = vunpack.c.h.b16 %v1667
    %v1973 = vunpack.c.l.b16 %v1668
    %v1974 = vunpack.c.h.b16 %v1668
    %v1975 = vunpack.c.l.b16 %v1669
    %v1976 = vunpack.c.h.b16 %v1669
    %v1977 = vunpack.c.l.b16 %v1670
    %v1978 = vunpack.c.h.b16 %v1670
    %v1979 = vunpack.c.l.b16 %v1671
    %v1980 = vunpack.c.h.b16 %v1671
    %v1981 = vunpack.c.l.b16 %v1672
    %v1982 = vunpack.c.h.b16 %v1672
    %v1983 = vunpack.c.l.b16 %v1673
    %v1984 = vunpack.c.h.b16 %v1673
    %v1985 = vunpack.c.l.b16 %v1674
    %v1986 = vunpack.c.h.b16 %v1674
    %v1987 = vunpack.c.l.b16 %v1675
    %v1988 = vunpack.c.h.b16 %v1675
    %v1989 = vunpack.c.l.b16 %v1676
    %v1990 = vunpack.c.h.b16 %v1676
    %v1991 = vunpack.c.l.b16 %v1677
    %v1992 = vunpack.c.h.b16 %v1677
    %v1993 = vunpack.c.l.b16 %v1678
    %v1994 = vunpack.c.h.b16 %v1678
    %v1995 = vunpack.c.l.b16 %v1679
    %v1996 = vunpack.c.h.b16 %v1679
    %v1997 = vunpack.c.l.b16 %v1680
    %v1998 = vunpack.c.h.b16 %v1680
    %v1999 = vunpack.c.l.b16 %v1681
    %v2000 = vunpack.c.h.b16 %v1681
    %v2001 = vunpack.c.l.b16 %v1682
    %v2002 = vunpack.c.h.b16 %v1682
    %v2003 = vunpack.c.l.b16 %v1683
    %v2004 = vunpack.c.h.b16 %v1683
    %v2005 = vunpack.c.l.b16 %v1684
    %v2006 = vunpack.c.h.b16 %v1684
    %v2007 = vunpack.c.l.b16 %v1685
    %v2008 = vunpack.c.h.b16 %v1685
    %v2009 = vunpack.c.l.b16 %v1686
    %v2010 = vunpack.c.h.b16 %v1686
    %v2011 = vunpack.c.l.b16 %v1687
    %v2012 = vunpack.c.h.b16 %v1687
    %v2013 = vunpack.c.l.b16 %v1688
    %v2014 = vunpack.c.h.b16 %v1688
    %v2015 = vunpack.c.l.b16 %v1689
    %v2016 = vunpack.c.h.b16 %v1689
    %v2017 = vunpack.c.l.b16 %v1690
    %v2018 = vunpack.c.h.b16 %v1690
    %v2019 = vunpack.c.l.b16 %v1691
    %v2020 = vunpack.c.h.b16 %v1691
    %v2021 = vunpack.c.l.b16 %v1692
    %v2022 = vunpack.c.h.b16 %v1692
    %v2023 = vunpack.c.l.b16 %v1693
    %v2024 = vunpack.c.h.b16 %v1693
    %v2025 = vunpack.c.l.b16 %v1694
    %v2026 = vunpack.c.h.b16 %v1694
    %v2027 = vunpack.c.l.b16 %v1695
    %v2028 = vunpack.c.h.b16 %v1695
    %v2029 = vunpack.c.l.b16 %v1696
    %v2030 = vunpack.c.h.b16 %v1696
    %v2031 = vunpack.c.l.b16 %v1697
    %v2032 = vunpack.c.h.b16 %v1697
    %v2033 = vunpack.c.l.b16 %v1698
    %v2034 = vunpack.c.h.b16 %v1698
    %v2035 = vunpack.c.l.b16 %v1699
    %v2036 = vunpack.c.h.b16 %v1699
    %v2037 = vunpack.c.l.b16 %v1700
    %v2038 = vunpack.c.h.b16 %v1700
    %v2039 = vunpack.c.l.b16 %v1701
    %v2040 = vunpack.c.h.b16 %v1701
    %v2041 = vunpack.c.l.b16 %v1702
    %v2042 = vunpack.c.h.b16 %v1702
    %v2043 = vunpack.c.l.b16 %v1703
    %v2044 = vunpack.c.h.b16 %v1703
    %v2045 = vunpack.c.l.b16 %v1704
    %v2046 = vunpack.c.h.b16 %v1704
    %v2047 = vunpack.c.l.b16 %v1705
    %v2048 = vunpack.c.h.b16 %v1705
    %v2049 = vunpack.c.l.b16 %v1706
    %v2050 = vunpack.c.h.b16 %v1706
    %v2051 = vunpack.c.l.b16 %v1707
    %v2052 = vunpack.c.h.b16 %v1707
    %v2053 = vunpack.c.l.b16 %v1708
    %v2054 = vunpack.c.h.b16 %v1708
    %v2055 = vunpack.c.l.b16 %v1709
    %v2056 = vunpack.c.h.b16 %v1709
    %v2057 = vunpack.c.l.b16 %v1710
    %v2058 = vunpack.c.h.b16 %v1710
    %v2059 = vunpack.c.l.b16 %v1711
    %v2060 = vunpack.c.h.b16 %v1711
    %v2061 = vunpack.c.l.b16 %v1712
    %v2062 = vunpack.c.h.b16 %v1712
    %v2063 = vunpack.c.l.b16 %v1713
    %v2064 = vunpack.c.h.b16 %v1713
    %v2065 = vunpack.c.l.b16 %v1714
    %v2066 = vunpack.c.h.b16 %v1714
    %v2067 = vunpack.c.l.b16 %v1715
    %v2068 = vunpack.c.h.b16 %v1715
    %v2069 = vunpack.c.l.b16 %v1716
    %v2070 = vunpack.c.h.b16 %v1716
    %v2071 = vunpack.c.l.b16 %v1717
    %v2072 = vunpack.c.h.b16 %v1717
    %v2073 = vunpack.c.l.b16 %v1718
    %v2074 = vunpack.c.h.b16 %v1718
    %v2075 = vunpack.c.l.b16 %v1719
    %v2076 = vunpack.c.h.b16 %v1719
    %v2077 = vunpack.c.l.b16 %v1720
    %v2078 = vunpack.c.h.b16 %v1720
    %v2079 = vunpack.c.l.b16 %v1721
    %v2080 = vunpack.c.h.b16 %v1721
    %v2081 = vunpack.c.l.b16 %v1722
    %v2082 = vunpack.c.h.b16 %v1722
    %v2083 = vunpack.c.l.b16 %v1723
    %v2084 = vunpack.c.h.b16 %v1723
    %v2085 = vunpack.c.l.b16 %v1724
    %v2086 = vunpack.c.h.b16 %v1724
    %v2087 = vunpack.c.l.b16 %v1725
    %v2088 = vunpack.c.h.b16 %v1725
    %v2089 = vunpack.c.l.b16 %v1726
    %v2090 = vunpack.c.h.b16 %v1726
    %v2091 = vunpack.c.l.b16 %v1727
    %v2092 = vunpack.c.h.b16 %v1727
    %v2093 = vunpack.c.l.b16 %v1728
    %v2094 = vunpack.c.h.b16 %v1728
    %v2095 = vunpack.c.l.b16 %v1729
    %v2096 = vunpack.c.h.b16 %v1729
    %v2097 = vunpack.c.l.b16 %v1730
    %v2098 = vunpack.c.h.b16 %v1730
    %v2099 = vunpack.c.l.b16 %v1731
    %v2100 = vunpack.c.h.b16 %v1731
    %v2101 = vunpack.c.l.b16 %v1732
    %v2102 = vunpack.c.h.b16 %v1732
    %v2103 = vunpack.c.l.b16 %v1733
    %v2104 = vunpack.c.h.b16 %v1733
    %v2105 = vunpack.c.l.b16 %v1734
    %v2106 = vunpack.c.h.b16 %v1734
    %v2107 = vunpack.c.l.b16 %v1735
    %v2108 = vunpack.c.h.b16 %v1735
    %v2109 = vunpack.c.l.b16 %v1736
    %v2110 = vunpack.c.h.b16 %v1736
    %v2111 = vunpack.c.l.b16 %v1737
    %v2112 = vunpack.c.h.b16 %v1737
    %v2113 = vunpack.c.l.b16 %v1738
    %v2114 = vunpack.c.h.b16 %v1738
    %v2115 = vunpack.c.l.b16 %v1739
    %v2116 = vunpack.c.h.b16 %v1739
    %v2117 = vunpack.c.l.b16 %v1740
    %v2118 = vunpack.c.h.b16 %v1740
    %v2119 = vunpack.c.l.b16 %v1741
    %v2120 = vunpack.c.h.b16 %v1741
    %v2121 = vunpack.c.l.b16 %v1742
    %v2122 = vunpack.c.h.b16 %v1742
    %v2123 = vunpack.c.l.b16 %v1743
    %v2124 = vunpack.c.h.b16 %v1743
    %v2125 = vunpack.c.l.b16 %v1744
    %v2126 = vunpack.c.h.b16 %v1744
    %v2127 = vunpack.c.l.b16 %v1745
    %v2128 = vunpack.c.h.b16 %v1745
    %v2129 = vunpack.c.l.b16 %v1746
    %v2130 = vunpack.c.h.b16 %v1746
    %v2131 = vunpack.c.l.b16 %v1747
    %v2132 = vunpack.c.h.b16 %v1747
    %v2133 = vunpack.c.l.b16 %v1748
    %v2134 = vunpack.c.h.b16 %v1748
    %v2135 = vunpack.c.l.b16 %v1749
    %v2136 = vunpack.c.h.b16 %v1749
    %v2137 = vunpack.c.l.b16 %v1750
    %v2138 = vunpack.c.h.b16 %v1750
    %v2139 = vunpack.c.l.b16 %v1751
    %v2140 = vunpack.c.h.b16 %v1751
    %v2141 = vunpack.c.l.b16 %v1752
    %v2142 = vunpack.c.h.b16 %v1752
    %v2143 = vunpack.c.l.b16 %v1753
    %v2144 = vunpack.c.h.b16 %v1753
    %v2145 = vunpack.c.l.b16 %v1754
    %v2146 = vunpack.c.h.b16 %v1754
    %v2147 = vunpack.c.l.b16 %v1755
    %v2148 = vunpack.c.h.b16 %v1755
    %v2149 = vunpack.c.l.b16 %v1756
    %v2150 = vunpack.c.h.b16 %v1756
    %v2151 = vunpack.c.l.b16 %v1757
    %v2152 = vunpack.c.h.b16 %v1757
    %v2153 = vunpack.c.l.b16 %v1758
    %v2154 = vunpack.c.h.b16 %v1758
    %v2155 = vunpack.c.l.b16 %v1759
    %v2156 = vunpack.c.h.b16 %v1759
    %v2157 = vunpack.c.l.b16 %v1760
    %v2158 = vunpack.c.h.b16 %v1760
    %v2159 = vunpack.c.l.b16 %v1761
    %v2160 = vunpack.c.h.b16 %v1761
    %v2161 = vunpack.c.l.b16 %v1762
    %v2162 = vunpack.c.h.b16 %v1762
    %v2163 = vunpack.c.l.b16 %v1763
    %v2164 = vunpack.c.h.b16 %v1763
    %v2165 = vunpack.c.l.b16 %v1764
    %v2166 = vunpack.c.h.b16 %v1764
    %v2167 = vunpack.c.l.b16 %v1765
    %v2168 = vunpack.c.h.b16 %v1765
    %v2169 = vunpack.c.l.b16 %v1766
    %v2170 = vunpack.c.h.b16 %v1766
    %v2171 = vunpack.c.l.b16 %v1767
    %v2172 = vunpack.c.h.b16 %v1767
    %v2173 = vunpack.c.l.b16 %v1768
    %v2174 = vunpack.c.h.b16 %v1768
    %v2175 = vpack.c.b16 %v1923, %v1919
    %v2176 = vpack.c.b16 %v1924, %v1920
    %v2177 = vpack.c.b16 %v1925, %v1921
    %v2178 = vpack.c.b16 %v1926, %v1922
    %v2179 = vpack.c.b16 %v1931, %v1927
    %v2180 = vpack.c.b16 %v1932, %v1928
    %v2181 = vpack.c.b16 %v1933, %v1929
    %v2182 = vpack.c.b16 %v1934, %v1930
    %v2183 = vpack.c.b16 %v1939, %v1935
    %v2184 = vpack.c.b16 %v1940, %v1936
    %v2185 = vpack.c.b16 %v1941, %v1937
    %v2186 = vpack.c.b16 %v1942, %v1938
    %v2187 = vpack.c.b16 %v1947, %v1943
    %v2188 = vpack.c.b16 %v1948, %v1944
    %v2189 = vpack.c.b16 %v1949, %v1945
    %v2190 = vpack.c.b16 %v1950, %v1946
    %v2191 = vpack.c.b16 %v1955, %v1951
    %v2192 = vpack.c.b16 %v1956, %v1952
    %v2193 = vpack.c.b16 %v1957, %v1953
    %v2194 = vpack.c.b16 %v1958, %v1954
    %v2195 = vpack.c.b16 %v1963, %v1959
    %v2196 = vpack.c.b16 %v1964, %v1960
    %v2197 = vpack.c.b16 %v1965, %v1961
    %v2198 = vpack.c.b16 %v1966, %v1962
    %v2199 = vpack.c.b16 %v1971, %v1967
    %v2200 = vpack.c.b16 %v1972, %v1968
    %v2201 = vpack.c.b16 %v1973, %v1969
    %v2202 = vpack.c.b16 %v1974, %v1970
    %v2203 = vpack.c.b16 %v1979, %v1975
    %v2204 = vpack.c.b16 %v1980, %v1976
    %v2205 = vpack.c.b16 %v1981, %v1977
    %v2206 = vpack.c.b16 %v1982, %v1978
    %v2207 = vpack.c.b16 %v1987, %v1983
    %v2208 = vpack.c.b16 %v1988, %v1984
    %v2209 = vpack.c.b16 %v1989, %v1985
    %v2210 = vpack.c.b16 %v1990, %v1986
    %v2211 = vpack.c.b16 %v1995, %v1991
    %v2212 = vpack.c.b16 %v1996, %v1992
    %v2213 = vpack.c.b16 %v1997, %v1993
    %v2214 = vpack.c.b16 %v1998, %v1994
    %v2215 = vpack.c.b16 %v2003, %v1999
    %v2216 = vpack.c.b16 %v2004, %v2000
    %v2217 = vpack.c.b16 %v2005, %v2001
    %v2218 = vpack.c.b16 %v2006, %v2002
    %v2219 = vpack.c.b16 %v2011, %v2007
    %v2220 = vpack.c.b16 %v2012, %v2008
    %v2221 = vpack.c.b16 %v2013, %v2009
    %v2222 = vpack.c.b16 %v2014, %v2010
    %v2223 = vpack.c.b16 %v2019, %v2015
    %v2224 = vpack.c.b16 %v2020, %v2016
    %v2225 = vpack.c.b16 %v2021, %v2017
    %v2226 = vpack.c.b16 %v2022, %v2018
    %v2227 = vpack.c.b16 %v2027, %v2023
    %v2228 = vpack.c.b16 %v2028, %v2024
    %v2229 = vpack.c.b16 %v2029, %v2025
    %v2230 = vpack.c.b16 %v2030, %v2026
    %v2231 = vpack.c.b16 %v2035, %v2031
    %v2232 = vpack.c.b16 %v2036, %v2032
    %v2233 = vpack.c.b16 %v2037, %v2033
    %v2234 = vpack.c.b16 %v2038, %v2034
    %v2235 = vpack.c.b16 %v2043, %v2039
    %v2236 = vpack.c.b16 %v2044, %v2040
    %v2237 = vpack.c.b16 %v2045, %v2041
    %v2238 = vpack.c.b16 %v2046, %v2042
    %v2239 = vpack.c.b16 %v2051, %v2047
    %v2240 = vpack.c.b16 %v2052, %v2048
    %v2241 = vpack.c.b16 %v2053, %v2049
    %v2242 = vpack.c.b16 %v2054, %v2050
    %v2243 = vpack.c.b16 %v2059, %v2055
    %v2244 = vpack.c.b16 %v2060, %v2056
    %v2245 = vpack.c.b16 %v2061, %v2057
    %v2246 = vpack.c.b16 %v2062, %v2058
    %v2247 = vpack.c.b16 %v2067, %v2063
    %v2248 = vpack.c.b16 %v2068, %v2064
    %v2249 = vpack.c.b16 %v2069, %v2065
    %v2250 = vpack.c.b16 %v2070, %v2066
    %v2251 = vpack.c.b16 %v2075, %v2071
    %v2252 = vpack.c.b16 %v2076, %v2072
    %v2253 = vpack.c.b16 %v2077, %v2073
    %v2254 = vpack.c.b16 %v2078, %v2074
    %v2255 = vpack.c.b16 %v2083, %v2079
    %v2256 = vpack.c.b16 %v2084, %v2080
    %v2257 = vpack.c.b16 %v2085, %v2081
    %v2258 = vpack.c.b16 %v2086, %v2082
    %v2259 = vpack.c.b16 %v2091, %v2087
    %v2260 = vpack.c.b16 %v2092, %v2088
    %v2261 = vpack.c.b16 %v2093, %v2089
    %v2262 = vpack.c.b16 %v2094, %v2090
    %v2263 = vpack.c.b16 %v2099, %v2095
    %v2264 = vpack.c.b16 %v2100, %v2096
    %v2265 = vpack.c.b16 %v2101, %v2097
    %v2266 = vpack.c.b16 %v2102, %v2098
    %v2267 = vpack.c.b16 %v2107, %v2103
    %v2268 = vpack.c.b16 %v2108, %v2104
    %v2269 = vpack.c.b16 %v2109, %v2105
    %v2270 = vpack.c.b16 %v2110, %v2106
    %v2271 = vpack.c.b16 %v2115, %v2111
    %v2272 = vpack.c.b16 %v2116, %v2112
    %v2273 = vpack.c.b16 %v2117, %v2113
    %v2274 = vpack.c.b16 %v2118, %v2114
    %v2275 = vpack.c.b16 %v2123, %v2119
    %v2276 = vpack.c.b16 %v2124, %v2120
    %v2277 = vpack.c.b16 %v2125, %v2121
    %v2278 = vpack.c.b16 %v2126, %v2122
    %v2279 = vpack.c.b16 %v2131, %v2127
    %v2280 = vpack.c.b16 %v2132, %v2128
    %v2281 = vpack.c.b16 %v2133, %v2129
    %v2282 = vpack.c.b16 %v2134, %v2130
    %v2283 = vpack.c.b16 %v2139, %v2135
    %v2284 = vpack.c.b16 %v2140, %v2136
    %v2285 = vpack.c.b16 %v2141, %v2137
    %v2286 = vpack.c.b16 %v2142, %v2138
    %v2287 = vpack.c.b16 %v2147, %v2143
    %v2288 = vpack.c.b16 %v2148, %v2144
    %v2289 = vpack.c.b16 %v2149, %v2145
    %v2290 = vpack.c.b16 %v2150, %v2146
    %v2291 = vpack.c.b16 %v2155, %v2151
    %v2292 = vpack.c.b16 %v2156, %v2152
    %v2293 = vpack.c.b16 %v2157, %v2153
    %v2294 = vpack.c.b16 %v2158, %v2154
    %v2295 = vpack.c.b16 %v2163, %v2159
    %v2296 = vpack.c.b16 %v2164, %v2160
    %v2297 = vpack.c.b16 %v2165, %v2161
    %v2298 = vpack.c.b16 %v2166, %v2162
    %v2299 = vpack.c.b16 %v2171, %v2167
    %v2300 = vpack.c.b16 %v2172, %v2168
    %v2301 = vpack.c.b16 %v2173, %v2169
    %v2302 = vpack.c.b16 %v2174, %v2170
    %2431 = vmatprep.subr.bf16.mxu0 %v2176
    %2432 = vmatpush1.bf16.msra.mxu0 %v2175
    %2433 = vmatprep.subr.bf16.mxu0 %v2180
    %2434 = vmatpush1.bf16.msra.mxu0 %v2179
    %2435 = vmatprep.subr.bf16.mxu0 %v2184
    %2436 = vmatpush1.bf16.msra.mxu0 %v2183
    %2437 = vmatprep.subr.bf16.mxu0 %v2188
    %2438 = vmatpush1.bf16.msra.mxu0 %v2187
    %2439 = vmatprep.subr.bf16.mxu0 %v2192
    %2440 = vmatpush1.bf16.msra.mxu0 %v2191
    %2441 = vmatprep.subr.bf16.mxu0 %v2196
    %2442 = vmatpush1.bf16.msra.mxu0 %v2195
    %2443 = vmatprep.subr.bf16.mxu0 %v2200
    %2444 = vmatpush1.bf16.msra.mxu0 %v2199
    %2445 = vmatprep.subr.bf16.mxu0 %v2204
    %2446 = vmatpush1.bf16.msra.mxu0 %v2203
    %2447 = vmatprep.subr.bf16.mxu0 %v2208
    %2448 = vmatpush1.bf16.msra.mxu0 %v2207
    %2449 = vmatprep.subr.bf16.mxu0 %v2212
    %2450 = vmatpush1.bf16.msra.mxu0 %v2211
    %2451 = vmatprep.subr.bf16.mxu0 %v2216
    %2452 = vmatpush1.bf16.msra.mxu0 %v2215
    %2453 = vmatprep.subr.bf16.mxu0 %v2220
    %2454 = vmatpush1.bf16.msra.mxu0 %v2219
    %2455 = vmatprep.subr.bf16.mxu0 %v2224
    %2456 = vmatpush1.bf16.msra.mxu0 %v2223
    %2457 = vmatprep.subr.bf16.mxu0 %v2228
    %2458 = vmatpush1.bf16.msra.mxu0 %v2227
    %2459 = vmatprep.subr.bf16.mxu0 %v2232
    %2460 = vmatpush1.bf16.msra.mxu0 %v2231
    %2461 = vmatprep.subr.bf16.mxu0 %v2236
    %2462 = vmatpush1.bf16.msra.mxu0 %v2235
    %2463 = vmatprep.mubr.bf16.mxu0 %v1638
    %2464 = vmatmul.mubr.bf16.gmra.mrb[0].mxu0 %v1637
    %v2465 = vpop.f32.mrb[0].mxu0
    %v2466 = vadd.f32 %v1774, %v2465
    %v2467 = vpop.f32.mrb[0].mxu0
    %v2468 = vadd.f32 %v1778, %v2467
    %v2469 = vpop.f32.mrb[0].mxu0
    %v2470 = vpop.f32.mrb[0].mxu0
    %2471 = vdwg.mxu0
    %2472 = vmatprep.subr.bf16.mxu0 %v2240
    %2473 = vmatpush1.bf16.msra.mxu0 %v2239
    %2474 = vmatprep.subr.bf16.mxu0 %v2244
    %2475 = vmatpush1.bf16.msra.mxu0 %v2243
    %2476 = vmatprep.subr.bf16.mxu0 %v2248
    %2477 = vmatpush1.bf16.msra.mxu0 %v2247
    %2478 = vmatprep.subr.bf16.mxu0 %v2252
    %2479 = vmatpush1.bf16.msra.mxu0 %v2251
    %2480 = vmatprep.subr.bf16.mxu0 %v2256
    %2481 = vmatpush1.bf16.msra.mxu0 %v2255
    %2482 = vmatprep.subr.bf16.mxu0 %v2260
    %2483 = vmatpush1.bf16.msra.mxu0 %v2259
    %2484 = vmatprep.subr.bf16.mxu0 %v2264
    %2485 = vmatpush1.bf16.msra.mxu0 %v2263
    %2486 = vmatprep.subr.bf16.mxu0 %v2268
    %2487 = vmatpush1.bf16.msra.mxu0 %v2267
    %2488 = vmatprep.subr.bf16.mxu0 %v2272
    %2489 = vmatpush1.bf16.msra.mxu0 %v2271
    %2490 = vmatprep.subr.bf16.mxu0 %v2276
    %2491 = vmatpush1.bf16.msra.mxu0 %v2275
    %2492 = vmatprep.subr.bf16.mxu0 %v2280
    %2493 = vmatpush1.bf16.msra.mxu0 %v2279
    %2494 = vmatprep.subr.bf16.mxu0 %v2284
    %2495 = vmatpush1.bf16.msra.mxu0 %v2283
    %2496 = vmatprep.subr.bf16.mxu0 %v2288
    %2497 = vmatpush1.bf16.msra.mxu0 %v2287
    %2498 = vmatprep.subr.bf16.mxu0 %v2292
    %2499 = vmatpush1.bf16.msra.mxu0 %v2291
    %2500 = vmatprep.subr.bf16.mxu0 %v2296
    %2501 = vmatpush1.bf16.msra.mxu0 %v2295
    %2502 = vmatprep.subr.bf16.mxu0 %v2300
    %2503 = vmatpush1.bf16.msra.mxu0 %v2299
    %2504 = vmatprep.mubr.bf16.mxu0 %v1640
    %2505 = vmatmul.mubr.bf16.gmra.mrb[0].mxu0 %v1639
    %v2506 = vpop.f32.mrb[0].mxu0
    %v2507 = vadd.f32 %v2466, %v2506
    %v2508 = vpop.f32.mrb[0].mxu0
    %v2509 = vadd.f32 %v2468, %v2508
    %v2510 = vpop.f32.mrb[0].mxu0
    %v2511 = vpop.f32.mrb[0].mxu0
    %2512 = vdwg.mxu0
    %2513 = vmatprep.subr.bf16.mxu0 %v2178
    %2514 = vmatpush1.bf16.msra.mxu0 %v2177
    %2515 = vmatprep.subr.bf16.mxu0 %v2182
    %2516 = vmatpush1.bf16.msra.mxu0 %v2181
    %2517 = vmatprep.subr.bf16.mxu0 %v2186
    %2518 = vmatpush1.bf16.msra.mxu0 %v2185
    %2519 = vmatprep.subr.bf16.mxu0 %v2190
    %2520 = vmatpush1.bf16.msra.mxu0 %v2189
    %2521 = vmatprep.subr.bf16.mxu0 %v2194
    %2522 = vmatpush1.bf16.msra.mxu0 %v2193
    %2523 = vmatprep.subr.bf16.mxu0 %v2198
    %2524 = vmatpush1.bf16.msra.mxu0 %v2197
    %2525 = vmatprep.subr.bf16.mxu0 %v2202
    %2526 = vmatpush1.bf16.msra.mxu0 %v2201
    %2527 = vmatprep.subr.bf16.mxu0 %v2206
    %2528 = vmatpush1.bf16.msra.mxu0 %v2205
    %2529 = vmatprep.subr.bf16.mxu0 %v2210
    %2530 = vmatpush1.bf16.msra.mxu0 %v2209
    %2531 = vmatprep.subr.bf16.mxu0 %v2214
    %2532 = vmatpush1.bf16.msra.mxu0 %v2213
    %2533 = vmatprep.subr.bf16.mxu0 %v2218
    %2534 = vmatpush1.bf16.msra.mxu0 %v2217
    %2535 = vmatprep.subr.bf16.mxu0 %v2222
    %2536 = vmatpush1.bf16.msra.mxu0 %v2221
    %2537 = vmatprep.subr.bf16.mxu0 %v2226
    %2538 = vmatpush1.bf16.msra.mxu0 %v2225
    %2539 = vmatprep.subr.bf16.mxu0 %v2230
    %2540 = vmatpush1.bf16.msra.mxu0 %v2229
    %2541 = vmatprep.subr.bf16.mxu0 %v2234
    %2542 = vmatpush1.bf16.msra.mxu0 %v2233
    %2543 = vmatprep.subr.bf16.mxu0 %v2238
    %2544 = vmatpush1.bf16.msra.mxu0 %v2237
    %2545 = vmatprep.mubr.bf16.mxu0 %v1638
    %2546 = vmatmul.mubr.bf16.gmra.mrb[0].mxu0 %v1637
    %v2547 = vpop.f32.mrb[0].mxu0
    %v2548 = vadd.f32 %v1782, %v2547
    %v2549 = vpop.f32.mrb[0].mxu0
    %v2550 = vadd.f32 %v1786, %v2549
    %v2551 = vpop.f32.mrb[0].mxu0
    %v2552 = vpop.f32.mrb[0].mxu0
    %2553 = vdwg.mxu0
    %2554 = vmatprep.subr.bf16.mxu0 %v2242
    %2555 = vmatpush1.bf16.msra.mxu0 %v2241
    %2556 = vmatprep.subr.bf16.mxu0 %v2246
    %2557 = vmatpush1.bf16.msra.mxu0 %v2245
    %2558 = vmatprep.subr.bf16.mxu0 %v2250
    %2559 = vmatpush1.bf16.msra.mxu0 %v2249
    %2560 = vmatprep.subr.bf16.mxu0 %v2254
    %2561 = vmatpush1.bf16.msra.mxu0 %v2253
    %2562 = vmatprep.subr.bf16.mxu0 %v2258
    %2563 = vmatpush1.bf16.msra.mxu0 %v2257
    %2564 = vmatprep.subr.bf16.mxu0 %v2262
    %2565 = vmatpush1.bf16.msra.mxu0 %v2261
    %2566 = vmatprep.subr.bf16.mxu0 %v2266
    %2567 = vmatpush1.bf16.msra.mxu0 %v2265
    %2568 = vmatprep.subr.bf16.mxu0 %v2270
    %2569 = vmatpush1.bf16.msra.mxu0 %v2269
    %2570 = vmatprep.subr.bf16.mxu0 %v2274
    %2571 = vmatpush1.bf16.msra.mxu0 %v2273
    %2572 = vmatprep.subr.bf16.mxu0 %v2278
    %2573 = vmatpush1.bf16.msra.mxu0 %v2277
    %2574 = vmatprep.subr.bf16.mxu0 %v2282
    %2575 = vmatpush1.bf16.msra.mxu0 %v2281
    %2576 = vmatprep.subr.bf16.mxu0 %v2286
    %2577 = vmatpush1.bf16.msra.mxu0 %v2285
    %2578 = vmatprep.subr.bf16.mxu0 %v2290
    %2579 = vmatpush1.bf16.msra.mxu0 %v2289
    %2580 = vmatprep.subr.bf16.mxu0 %v2294
    %2581 = vmatpush1.bf16.msra.mxu0 %v2293
    %2582 = vmatprep.subr.bf16.mxu0 %v2298
    %2583 = vmatpush1.bf16.msra.mxu0 %v2297
    %2584 = vmatprep.subr.bf16.mxu0 %v2302
    %2585 = vmatpush1.bf16.msra.mxu0 %v2301
    %2586 = vmatprep.mubr.bf16.mxu0 %v1640
    %2587 = vmatmul.mubr.bf16.gmra.mrb[0].mxu0 %v1639
    %v2588 = vpop.f32.mrb[0].mxu0
    %v2589 = vadd.f32 %v2548, %v2588
    %v2590 = vpop.f32.mrb[0].mxu0
    %v2591 = vadd.f32 %v2550, %v2590
    %v2592 = vpop.f32.mrb[0].mxu0
    %v2593 = vpop.f32.mrb[0].mxu0
    %2594 = vdwg.mxu0
    %v2595 = vmax.f32 %v2507, 0.0
    %v2596 = vmax.f32 %v2509, 0.0
    %v2597 = vmax.f32 %v2589, 0.0
    %v2598 = vmax.f32 %v2591, 0.0
    %v2599 = vpack.c.bf16 %v2595, %v2595
    %v2600 = vpack.c.bf16 %v2596, %v2596
    %v2601 = vpack.c.bf16 %v2597, %v2597
    %v2602 = vpack.c.bf16 %v2598, %v2598
    %v2607 = vcombine.low %v2599, %v2600
    %v2608 = vcombine.low %v2601, %v2602
    %v2610 = vunpack.c.l.s4 1966171168
    %v2611 = vunpack.c.0.s8 %v2610
    %v2612 = vlaneseq
    %v2613 = vshrl.u32 %v2612, 7
    %v2614 = vsub.s32 %v2611, %v2613
    %v2615 = vrot.slane %v2607, %v2614
    %v2617 = vunpack.c.l.s4 1966171168
    %v2618 = vunpack.c.0.s8 %v2617
    %v2619 = vlaneseq
    %v2620 = vshrl.u32 %v2619, 7
    %v2621 = vsub.s32 %v2618, %v2620
    %v2622 = vrot.slane %v2608, %v2621
    %v2623 = vcombine.low %v2615, %v2622
    %v2624 = vcombine.high %v2615, %v2622
    %v2626 = vunpack.c.l.s4 1966171168
    %v2627 = vunpack.c.0.s8 %v2626
    %v2628 = vlaneseq
    %v2629 = vshrl.u32 %v2628, 7
    %v2630 = vsub.s32 %v2627, %v2629
    %v2631 = vrot.slane %v2623, %v2630
    %v2633 = vunpack.c.l.s4 1966171168
    %v2634 = vunpack.c.0.s8 %v2633
    %v2635 = vlaneseq
    %v2636 = vshrl.u32 %v2635, 7
    %v2637 = vsub.s32 %v2634, %v2636
    %v2638 = vrot.slane %v2624, %v2637
    %v2639 = vcombine.high %v2631, %v2631
    %v2640 = vcombine.high %v2638, %v2638
    %2645 = vst [vmem:[#allocation2] sm:$0xf] %v2631
    %2646 = vst [vmem:[#allocation2 + $0x4] sm:$0xf] %v2638
    %2647 = vst [vmem:[#allocation2 + $0x8] sm:$0xf] %v2639
    %2648 = vst [vmem:[#allocation2 + $0xc] sm:$0xf] %v2640
    // Predicated region
    $region22: #{mlp_feat.1} parent=1 // pred_check
      _
    $region23: #{mlp_feat.1} parent=1 // pred_check_branch
      %2650 = sbr.rel (0) target = $region25
    $region24: #{mlp_feat.1} parent=1 // pred_region
      %s2652 = ssub.s32 256, 64
      %2653 = vsyncadd [#allocation3], %s2652
      %s2654 = sshll.u32 [#allocation2], 4
      %s2655 = int_to_ptr.vmem [resolvable:$true] %s2654
      %2660 = dma.vmem_to_hbm [thread:$0]  %s2655, 64, %s5, [#allocation3], 64, 64, 4
    $region25: #{mlp_feat.1} parent=1 // pred_fallthru
      _
    // Predicated region
    $region26: #{mlp_feat.1} parent=1 // pred_check
      _
    $region27: #{mlp_feat.1} parent=1 // pred_check_branch
      %2662 = sbr.rel (0) target = $region29
    $region28: #{mlp_feat.1} parent=1 // pred_region
      %2663 = dma.done [#allocation3], 256
    $region29: #{mlp_feat.1} parent=1 // pred_fallthru
      _
    %2664 = vsyncpa [#allocation3], 1

</llo_original>
